<compile_context>
chip_gen: v7x
topology: tpu7x:2x2x1
jax: 0.10.0
libtpu: 0.0.40
codegen_flags: <defaults>
</compile_context>

<pallas_src>
import jax
import jax.numpy as jnp
from jax import lax
from jax.experimental import pallas as pl
from jax.experimental.pallas import tpu as pltpu
import numpy as np


# ---------------------------------------------------------------------------
# Fully fused forward kernel (per batch sample; grid over batch)
# ---------------------------------------------------------------------------
def fused_net_kernel(p1_ref, w1_ref, sh1_ref, w2_ref, sh2_ref,
                     wf1_ref, bf1_ref, wf2_ref, bf2_ref,
                     out_ref,
                     a1_s, p1_s, h2_s, p2_s):
    f32 = jnp.float32

    # ---- conv1 (taps packed along K=28) + folded BN + ReLU -> (49, 16) ------
    # rows of a1_s are y*7 + x, y,x in [0,7)
    a1 = jnp.dot(p1_ref[0], w1_ref[...], preferred_element_type=f32)
    a1_s[...] = jnp.maximum(a1 + sh1_ref[...], 0.0)

    # ---- maxpool1 2x2/s1: 4-way max over shifted row slabs -> (41, 16) ------
    # valid rows: y*7 + x with y,x in [0,6); other rows are finite garbage
    p1_s[...] = jnp.maximum(
        jnp.maximum(a1_s[pl.ds(0, 41), :], a1_s[pl.ds(1, 41), :]),
        jnp.maximum(a1_s[pl.ds(7, 41), :], a1_s[pl.ds(8, 41), :]))

    # ---- conv2 (4 shifted taps accumulated on MXU) + folded BN + ReLU -------
    # valid rows: y*7 + x with y,x in [0,5)
    acc = jnp.dot(p1_s[pl.ds(0, 33), :], w2_ref[0], preferred_element_type=f32)
    acc = acc + jnp.dot(p1_s[pl.ds(1, 33), :], w2_ref[1], preferred_element_type=f32)
    acc = acc + jnp.dot(p1_s[pl.ds(7, 33), :], w2_ref[2], preferred_element_type=f32)
    acc = acc + jnp.dot(p1_s[pl.ds(8, 33), :], w2_ref[3], preferred_element_type=f32)
    h2_s[...] = jnp.maximum(acc + sh2_ref[...], 0.0)

    # ---- maxpool2 2x2/s1 -> (25, 32); valid rows y*7 + x, y,x in [0,4) ------
    p2_s[...] = jnp.maximum(
        jnp.maximum(h2_s[pl.ds(0, 25), :], h2_s[pl.ds(1, 25), :]),
        jnp.maximum(h2_s[pl.ds(7, 25), :], h2_s[pl.ds(8, 25), :]))

    # ---- flatten (implicit; fc1 weight rows pre-permuted) + fc1 + ReLU ------
    h = bf1_ref[...]                                     # (1, hidden)
    for q in range(16):                                  # q = y*4 + x (NHWC order)
        row = (q // 4) * 7 + (q % 4)
        h = h + jnp.dot(p2_s[pl.ds(row, 1), :], wf1_ref[q],
                        preferred_element_type=f32)
    h = jnp.maximum(h, 0.0)

    # ---- fc2 ----------------------------------------------------------------
    out_ref[0] = (jnp.dot(h, wf2_ref[...], preferred_element_type=f32)
                  + bf2_ref[...]).astype(out_ref.dtype)


# ---------------------------------------------------------------------------
# Wrapper: one-time input prep (NCHW->NHWC + conv1 im2col) and the fused call
# ---------------------------------------------------------------------------
def net_forward(x_nchw, params):
    N = x_nchw.shape[0]
    hidden = params["wf1"].shape[-1]
    n_act = params["wf2"].shape[-1]

    # One-time host-side prep on the network input (accepted once; everything
    # downstream stays in VMEM).  Feature index = tap*7 + cin, tap = di*2+dj.
    x = jnp.transpose(x_nchw, (0, 2, 3, 1)).astype(jnp.float32)          # (N,8,8,7)
    taps = [x[:, di:di + 7, dj:dj + 7, :] for di in range(2) for dj in range(2)]
    p1 = jnp.concatenate(taps, axis=-1).reshape(N, 49, 28)               # (N,49,28)

    out = pl.pallas_call(
        fused_net_kernel,
        out_shape=jax.ShapeDtypeStruct((N, 1, n_act), jnp.float32),
        grid_spec=pltpu.PrefetchScalarGridSpec(
            num_scalar_prefetch=0,
            grid=(N,),
            in_specs=[
                pl.BlockSpec((1, 49, 28), lambda n: (n, 0, 0)),          # conv1 patches
                pl.BlockSpec((28, 16), lambda n: (0, 0)),                # w1 (K-packed, BN folded)
                pl.BlockSpec((1, 16), lambda n: (0, 0)),                 # shift1
                pl.BlockSpec((4, 16, 32), lambda n: (0, 0, 0)),          # w2 taps (BN folded)
                pl.BlockSpec((1, 32), lambda n: (0, 0)),                 # shift2
                pl.BlockSpec((16, 32, hidden), lambda n: (0, 0, 0)),     # fc1 w (permuted)
                pl.BlockSpec((1, hidden), lambda n: (0, 0)),             # fc1 b
                pl.BlockSpec((hidden, n_act), lambda n: (0, 0)),         # fc2 w
                pl.BlockSpec((1, n_act), lambda n: (0, 0)),              # fc2 b
            ],
            out_specs=pl.BlockSpec((1, 1, n_act), lambda n: (n, 0, 0)),
            scratch_shapes=[
                pltpu.VMEM((49, 16), jnp.float32),   # conv1 output
                pltpu.VMEM((41, 16), jnp.float32),   # pool1 output
                pltpu.VMEM((33, 32), jnp.float32),   # conv2 output
                pltpu.VMEM((25, 32), jnp.float32),   # pool2 output
            ],
        ),
        compiler_params=pltpu.CompilerParams(
            dimension_semantics=("parallel",)),
    )(p1, params["w1p"], params["sh1"], params["w2t"], params["sh2"],
      params["wf1"], params["bf1"], params["wf2"], params["bf2"])
    return out.reshape(N, n_act)


# ---------------------------------------------------------------------------
# Deterministic parameter construction + host-side folding / packing
# ---------------------------------------------------------------------------
def make_params(hidden_size, n_actions, eps=1e-5):
    ks = jax.random.split(jax.random.PRNGKey(0), 16)

    def bn(kg, kb, km, kv, c):
        gamma = (1.0 + 0.1 * jax.random.normal(kg, (c,))).astype(jnp.float32)
        beta = (0.1 * jax.random.normal(kb, (c,))).astype(jnp.float32)
        rmean = (0.1 * jax.random.normal(km, (c,))).astype(jnp.float32)
        rvar = (1.0 + 0.1 * jnp.abs(jax.random.normal(kv, (c,)))).astype(jnp.float32)
        return gamma, beta, rmean, rvar

    w1 = (0.1 * jax.random.normal(ks[0], (16, 7, 2, 2))).astype(jnp.float32)    # OIHW
    b1 = (0.1 * jax.random.normal(ks[1], (16,))).astype(jnp.float32)
    g1, be1, m1, v1 = bn(ks[2], ks[3], ks[4], ks[5], 16)

    w2 = (0.1 * jax.random.normal(ks[6], (32, 16, 2, 2))).astype(jnp.float32)   # OIHW
    b2 = (0.1 * jax.random.normal(ks[7], (32,))).astype(jnp.float32)
    g2, be2, m2, v2 = bn(ks[8], ks[9], ks[10], ks[11], 32)

    fc1_w = (0.05 * jax.random.normal(ks[12], (hidden_size, 512))).astype(jnp.float32)  # torch (out,in)
    fc1_b = (0.05 * jax.random.normal(ks[13], (hidden_size,))).astype(jnp.float32)
    fc2_w = (0.05 * jax.random.normal(ks[14], (n_actions, hidden_size))).astype(jnp.float32)
    fc2_b = (0.05 * jax.random.normal(ks[15], (n_actions,))).astype(jnp.float32)

    raw = dict(w1=w1, b1=b1, g1=g1, be1=be1, m1=m1, v1=v1,
               w2=w2, b2=b2, g2=g2, be2=be2, m2=m2, v2=v2,
               fc1_w=fc1_w, fc1_b=fc1_b, fc2_w=fc2_w, fc2_b=fc2_b, eps=eps)

    # --- fold eval-mode BN into conv weights and a single per-channel shift ---
    s1 = g1 / jnp.sqrt(v1 + eps)
    sh1 = b1 * s1 + (be1 - m1 * s1)
    w1_sc = w1 * s1[:, None, None, None]                                 # (16,7,2,2)
    # rows ordered tap*7 + cin, tap = di*2 + dj  -> matches host-side im2col
    w1p = jnp.concatenate(
        [w1_sc[:, :, di, dj].T for di in range(2) for dj in range(2)], axis=0)   # (28,16)

    s2 = g2 / jnp.sqrt(v2 + eps)
    sh2 = b2 * s2 + (be2 - m2 * s2)
    w2_sc = w2 * s2[:, None, None, None]                                 # (32,16,2,2)
    w2t = jnp.stack(
        [w2_sc[:, :, di, dj].T for di in range(2) for dj in range(2)], axis=0)   # (4,16,32)

    # fc1 weight permuted so the kernel's NHWC position-major accumulation
    # matches PyTorch's NCHW flatten: torch feature index = c*16 + (y*4+x).
    wf1 = jnp.transpose(fc1_w.reshape(hidden_size, 32, 16), (2, 1, 0))   # (16,32,hidden)

    packed = dict(
        w1p=w1p, sh1=sh1.reshape(1, 16),
        w2t=w2t, sh2=sh2.reshape(1, 32),
        wf1=wf1, bf1=fc1_b.reshape(1, hidden_size),
        wf2=fc2_w.T, bf2=fc2_b.reshape(1, n_actions),
    )
    return packed, raw


# ---------------------------------------------------------------------------
# Pure-JAX reference (mirrors the PyTorch module, eval-mode BN)
# ---------------------------------------------------------------------------
def reference_forward(x_nchw, raw):
    x = x_nchw.astype(jnp.float32)

    def conv(h, w, b):
        y = lax.conv_general_dilated(h, w, (1, 1), "VALID",
                                     dimension_numbers=("NCHW", "OIHW", "NCHW"))
        return y + b[None, :, None, None]

    def bn(h, g, be, m, v):
        return ((h - m[None, :, None, None]) /
                jnp.sqrt(v[None, :, None, None] + raw["eps"]) *
                g[None, :, None, None] + be[None, :, None, None])

    def pool(h):
        return lax.reduce_window(h, -jnp.inf, lax.max, (1, 1, 2, 2), (1, 1, 1, 1), "VALID")

    h = pool(jnp.maximum(bn(conv(x, raw["w1"], raw["b1"]),
                            raw["g1"], raw["be1"], raw["m1"], raw["v1"]), 0.0))
    h = pool(jnp.maximum(bn(conv(h, raw["w2"], raw["b2"]),
                            raw["g2"], raw["be2"], raw["m2"], raw["v2"]), 0.0))
    h = h.reshape(h.shape[0], -1)                        # NCHW flatten (torch order)
    h = jnp.maximum(h @ raw["fc1_w"].T + raw["fc1_b"], 0.0)
    return h @ raw["fc2_w"].T + raw["fc2_b"]


if __name__ == "__main__":
    batch, hidden_size, n_actions = 2, 32, 4
    # TODO(synk): BatchNorm uses eval-mode (running-stat) semantics; training-mode
    #             batch statistics are not computed.
    params, raw = make_params(hidden_size, n_actions)

    x = jax.random.normal(jax.random.PRNGKey(0), (batch, 7, 8, 8), dtype=jnp.float32)

    out = jax.block_until_ready(jax.jit(net_forward)(x, params))
    ref = jax.block_until_ready(reference_forward(x, raw))

    assert out.shape == (batch, n_actions), out.shape
    np.testing.assert_allclose(np.asarray(out), np.asarray(ref), rtol=1e-4, atol=1e-4)
    print("KERNEL_OK")
</pallas_src>

<mosaic_0001>
module attributes {stable_mosaic.version = 11 : i64} {
  func.func @fused_net_kernel(%arg0: i32, %arg1: memref<1x49x28xf32, #tpu.memory_space<vmem>>, %arg2: memref<28x16xf32, #tpu.memory_space<vmem>>, %arg3: memref<1x16xf32, #tpu.memory_space<vmem>>, %arg4: memref<4x16x32xf32, #tpu.memory_space<vmem>>, %arg5: memref<1x32xf32, #tpu.memory_space<vmem>>, %arg6: memref<16x32x32xf32, #tpu.memory_space<vmem>>, %arg7: memref<1x32xf32, #tpu.memory_space<vmem>>, %arg8: memref<32x4xf32, #tpu.memory_space<vmem>>, %arg9: memref<1x4xf32, #tpu.memory_space<vmem>>, %arg10: memref<1x1x4xf32, #tpu.memory_space<vmem>>, %arg11: memref<49x16xf32, #tpu.memory_space<vmem>>, %arg12: memref<41x16xf32, #tpu.memory_space<vmem>>, %arg13: memref<33x32xf32, #tpu.memory_space<vmem>>, %arg14: memref<25x32xf32, #tpu.memory_space<vmem>>) attributes {dimension_semantics = [#tpu.dimension_semantics<parallel>], iteration_bounds = array<i64: 2>, scalar_prefetch = 0 : i64, scratch_operands = 4 : i64, tpu.core_type = #tpu.core_type<tc>, window_params = [{transform_indices = @transform_0, window_bounds = array<i64: 1, 49, 28>}, {pipeline_mode = #tpu.pipeline_mode<synchronous>, transform_indices = @transform_1, window_bounds = array<i64: 28, 16>}, {pipeline_mode = #tpu.pipeline_mode<synchronous>, transform_indices = @transform_2, window_bounds = array<i64: 1, 16>}, {pipeline_mode = #tpu.pipeline_mode<synchronous>, transform_indices = @transform_3, window_bounds = array<i64: 4, 16, 32>}, {pipeline_mode = #tpu.pipeline_mode<synchronous>, transform_indices = @transform_4, window_bounds = array<i64: 1, 32>}, {pipeline_mode = #tpu.pipeline_mode<synchronous>, transform_indices = @transform_5, window_bounds = array<i64: 16, 32, 32>}, {pipeline_mode = #tpu.pipeline_mode<synchronous>, transform_indices = @transform_6, window_bounds = array<i64: 1, 32>}, {pipeline_mode = #tpu.pipeline_mode<synchronous>, transform_indices = @transform_7, window_bounds = array<i64: 32, 4>}, {pipeline_mode = #tpu.pipeline_mode<synchronous>, transform_indices = @transform_8, window_bounds = array<i64: 1, 4>}, {transform_indices = @transform_9, window_bounds = array<i64: 1, 1, 4>}]} {
    %c0 = arith.constant 0 : index
    %c0_0 = arith.constant 0 : index
    %c0_1 = arith.constant 0 : index
    %0 = vector.load %arg1[%c0, %c0_0, %c0_1] : memref<1x49x28xf32, #tpu.memory_space<vmem>>, vector<1x49x28xf32>
    %1 = vector.shape_cast %0 : vector<1x49x28xf32> to vector<49x28xf32>
    %c0_2 = arith.constant 0 : index
    %c0_3 = arith.constant 0 : index
    %2 = vector.load %arg2[%c0_2, %c0_3] : memref<28x16xf32, #tpu.memory_space<vmem>>, vector<28x16xf32>
    %cst = arith.constant dense<0.000000e+00> : vector<49x16xf32>
    %3 = tpu.matmul %1, %2, %cst {dimension_numbers = #tpu.dot_dimension_numbers<[1], [0], [0], [1], [0, 0, 1, 1], [], []>} : vector<49x28xf32>, vector<28x16xf32>, vector<49x16xf32> -> vector<49x16xf32>
    %c0_4 = arith.constant 0 : index
    %c0_5 = arith.constant 0 : index
    %4 = vector.load %arg3[%c0_4, %c0_5] : memref<1x16xf32, #tpu.memory_space<vmem>>, vector<1x16xf32>
    %5 = vector.broadcast %4 : vector<1x16xf32> to vector<49x16xf32>
    %6 = arith.addf %3, %5 : vector<49x16xf32>
    %cst_6 = arith.constant 0.000000e+00 : f32
    %7 = vector.broadcast %cst_6 : f32 to vector<49x16xf32>
    %8 = arith.maximumf %6, %7 : vector<49x16xf32>
    %c0_7 = arith.constant 0 : index
    %c0_8 = arith.constant 0 : index
    %9 = vector.load %arg11[%c0_7, %c0_8] : memref<49x16xf32, #tpu.memory_space<vmem>>, vector<49x16xf32>
    tpu.vector_store %arg11[%c0_7, %c0_8], %8 {strides = array<i32>} : memref<49x16xf32, #tpu.memory_space<vmem>>, vector<49x16xf32>,
    %c0_9 = arith.constant 0 : index
    %c0_10 = arith.constant 0 : index
    %10 = vector.load %arg11[%c0_9, %c0_10] : memref<49x16xf32, #tpu.memory_space<vmem>>, vector<41x16xf32>
    %c1 = arith.constant 1 : index
    %c0_11 = arith.constant 0 : index
    %11 = vector.load %arg11[%c1, %c0_11] : memref<49x16xf32, #tpu.memory_space<vmem>>, vector<41x16xf32>
    %12 = arith.maximumf %10, %11 : vector<41x16xf32>
    %c7 = arith.constant 7 : index
    %c0_12 = arith.constant 0 : index
    %13 = vector.load %arg11[%c7, %c0_12] : memref<49x16xf32, #tpu.memory_space<vmem>>, vector<41x16xf32>
    %c8 = arith.constant 8 : index
    %c0_13 = arith.constant 0 : index
    %14 = vector.load %arg11[%c8, %c0_13] : memref<49x16xf32, #tpu.memory_space<vmem>>, vector<41x16xf32>
    %15 = arith.maximumf %13, %14 : vector<41x16xf32>
    %16 = arith.maximumf %12, %15 : vector<41x16xf32>
    %c0_14 = arith.constant 0 : index
    %c0_15 = arith.constant 0 : index
    %17 = vector.load %arg12[%c0_14, %c0_15] : memref<41x16xf32, #tpu.memory_space<vmem>>, vector<41x16xf32>
    tpu.vector_store %arg12[%c0_14, %c0_15], %16 {strides = array<i32>} : memref<41x16xf32, #tpu.memory_space<vmem>>, vector<41x16xf32>,
    %c0_16 = arith.constant 0 : index
    %c0_17 = arith.constant 0 : index
    %18 = vector.load %arg12[%c0_16, %c0_17] : memref<41x16xf32, #tpu.memory_space<vmem>>, vector<33x16xf32>
    %c0_18 = arith.constant 0 : index
    %c0_19 = arith.constant 0 : index
    %c0_20 = arith.constant 0 : index
    %19 = vector.load %arg4[%c0_18, %c0_19, %c0_20] : memref<4x16x32xf32, #tpu.memory_space<vmem>>, vector<1x16x32xf32>
    %20 = vector.shape_cast %19 : vector<1x16x32xf32> to vector<16x32xf32>
    %cst_21 = arith.constant dense<0.000000e+00> : vector<33x32xf32>
    %21 = tpu.matmul %18, %20, %cst_21 {dimension_numbers = #tpu.dot_dimension_numbers<[1], [0], [0], [1], [0, 0, 1, 1], [], []>} : vector<33x16xf32>, vector<16x32xf32>, vector<33x32xf32> -> vector<33x32xf32>
    %c1_22 = arith.constant 1 : index
    %c0_23 = arith.constant 0 : index
    %22 = vector.load %arg12[%c1_22, %c0_23] : memref<41x16xf32, #tpu.memory_space<vmem>>, vector<33x16xf32>
    %c1_24 = arith.constant 1 : index
    %c0_25 = arith.constant 0 : index
    %c0_26 = arith.constant 0 : index
    %23 = vector.load %arg4[%c1_24, %c0_25, %c0_26] : memref<4x16x32xf32, #tpu.memory_space<vmem>>, vector<1x16x32xf32>
    %24 = vector.shape_cast %23 : vector<1x16x32xf32> to vector<16x32xf32>
    %cst_27 = arith.constant dense<0.000000e+00> : vector<33x32xf32>
    %25 = tpu.matmul %22, %24, %cst_27 {dimension_numbers = #tpu.dot_dimension_numbers<[1], [0], [0], [1], [0, 0, 1, 1], [], []>} : vector<33x16xf32>, vector<16x32xf32>, vector<33x32xf32> -> vector<33x32xf32>
    %26 = arith.addf %21, %25 : vector<33x32xf32>
    %c7_28 = arith.constant 7 : index
    %c0_29 = arith.constant 0 : index
    %27 = vector.load %arg12[%c7_28, %c0_29] : memref<41x16xf32, #tpu.memory_space<vmem>>, vector<33x16xf32>
    %c2 = arith.constant 2 : index
    %c0_30 = arith.constant 0 : index
    %c0_31 = arith.constant 0 : index
    %28 = vector.load %arg4[%c2, %c0_30, %c0_31] : memref<4x16x32xf32, #tpu.memory_space<vmem>>, vector<1x16x32xf32>
    %29 = vector.shape_cast %28 : vector<1x16x32xf32> to vector<16x32xf32>
    %cst_32 = arith.constant dense<0.000000e+00> : vector<33x32xf32>
    %30 = tpu.matmul %27, %29, %cst_32 {dimension_numbers = #tpu.dot_dimension_numbers<[1], [0], [0], [1], [0, 0, 1, 1], [], []>} : vector<33x16xf32>, vector<16x32xf32>, vector<33x32xf32> -> vector<33x32xf32>
    %31 = arith.addf %26, %30 : vector<33x32xf32>
    %c8_33 = arith.constant 8 : index
    %c0_34 = arith.constant 0 : index
    %32 = vector.load %arg12[%c8_33, %c0_34] : memref<41x16xf32, #tpu.memory_space<vmem>>, vector<33x16xf32>
    %c3 = arith.constant 3 : index
    %c0_35 = arith.constant 0 : index
    %c0_36 = arith.constant 0 : index
    %33 = vector.load %arg4[%c3, %c0_35, %c0_36] : memref<4x16x32xf32, #tpu.memory_space<vmem>>, vector<1x16x32xf32>
    %34 = vector.shape_cast %33 : vector<1x16x32xf32> to vector<16x32xf32>
    %cst_37 = arith.constant dense<0.000000e+00> : vector<33x32xf32>
    %35 = tpu.matmul %32, %34, %cst_37 {dimension_numbers = #tpu.dot_dimension_numbers<[1], [0], [0], [1], [0, 0, 1, 1], [], []>} : vector<33x16xf32>, vector<16x32xf32>, vector<33x32xf32> -> vector<33x32xf32>
    %36 = arith.addf %31, %35 : vector<33x32xf32>
    %c0_38 = arith.constant 0 : index
    %c0_39 = arith.constant 0 : index
    %37 = vector.load %arg5[%c0_38, %c0_39] : memref<1x32xf32, #tpu.memory_space<vmem>>, vector<1x32xf32>
    %38 = vector.broadcast %37 : vector<1x32xf32> to vector<33x32xf32>
    %39 = arith.addf %36, %38 : vector<33x32xf32>
    %cst_40 = arith.constant 0.000000e+00 : f32
    %40 = vector.broadcast %cst_40 : f32 to vector<33x32xf32>
    %41 = arith.maximumf %39, %40 : vector<33x32xf32>
    %c0_41 = arith.constant 0 : index
    %c0_42 = arith.constant 0 : index
    %42 = vector.load %arg13[%c0_41, %c0_42] : memref<33x32xf32, #tpu.memory_space<vmem>>, vector<33x32xf32>
    tpu.vector_store %arg13[%c0_41, %c0_42], %41 {strides = array<i32>} : memref<33x32xf32, #tpu.memory_space<vmem>>, vector<33x32xf32>,
    %c0_43 = arith.constant 0 : index
    %c0_44 = arith.constant 0 : index
    %43 = vector.load %arg13[%c0_43, %c0_44] : memref<33x32xf32, #tpu.memory_space<vmem>>, vector<25x32xf32>
    %c1_45 = arith.constant 1 : index
    %c0_46 = arith.constant 0 : index
    %44 = vector.load %arg13[%c1_45, %c0_46] : memref<33x32xf32, #tpu.memory_space<vmem>>, vector<25x32xf32>
    %45 = arith.maximumf %43, %44 : vector<25x32xf32>
    %c7_47 = arith.constant 7 : index
    %c0_48 = arith.constant 0 : index
    %46 = vector.load %arg13[%c7_47, %c0_48] : memref<33x32xf32, #tpu.memory_space<vmem>>, vector<25x32xf32>
    %c8_49 = arith.constant 8 : index
    %c0_50 = arith.constant 0 : index
    %47 = vector.load %arg13[%c8_49, %c0_50] : memref<33x32xf32, #tpu.memory_space<vmem>>, vector<25x32xf32>
    %48 = arith.maximumf %46, %47 : vector<25x32xf32>
    %49 = arith.maximumf %45, %48 : vector<25x32xf32>
    %c0_51 = arith.constant 0 : index
    %c0_52 = arith.constant 0 : index
    %50 = vector.load %arg14[%c0_51, %c0_52] : memref<25x32xf32, #tpu.memory_space<vmem>>, vector<25x32xf32>
    tpu.vector_store %arg14[%c0_51, %c0_52], %49 {strides = array<i32>} : memref<25x32xf32, #tpu.memory_space<vmem>>, vector<25x32xf32>,
    %c0_53 = arith.constant 0 : index
    %c0_54 = arith.constant 0 : index
    %51 = vector.load %arg7[%c0_53, %c0_54] : memref<1x32xf32, #tpu.memory_space<vmem>>, vector<1x32xf32>
    %c0_55 = arith.constant 0 : index
    %c0_56 = arith.constant 0 : index
    %52 = vector.load %arg14[%c0_55, %c0_56] : memref<25x32xf32, #tpu.memory_space<vmem>>, vector<1x32xf32>
    %c0_57 = arith.constant 0 : index
    %c0_58 = arith.constant 0 : index
    %c0_59 = arith.constant 0 : index
    %53 = vector.load %arg6[%c0_57, %c0_58, %c0_59] : memref<16x32x32xf32, #tpu.memory_space<vmem>>, vector<1x32x32xf32>
    %54 = vector.shape_cast %53 : vector<1x32x32xf32> to vector<32x32xf32>
    %cst_60 = arith.constant dense<0.000000e+00> : vector<1x32xf32>
    %55 = tpu.matmul %52, %54, %cst_60 {dimension_numbers = #tpu.dot_dimension_numbers<[1], [0], [0], [1], [0, 0, 1, 1], [], []>} : vector<1x32xf32>, vector<32x32xf32>, vector<1x32xf32> -> vector<1x32xf32>
    %56 = arith.addf %51, %55 : vector<1x32xf32>
    %c1_61 = arith.constant 1 : index
    %c0_62 = arith.constant 0 : index
    %57 = vector.load %arg14[%c1_61, %c0_62] : memref<25x32xf32, #tpu.memory_space<vmem>>, vector<1x32xf32>
    %c1_63 = arith.constant 1 : index
    %c0_64 = arith.constant 0 : index
    %c0_65 = arith.constant 0 : index
    %58 = vector.load %arg6[%c1_63, %c0_64, %c0_65] : memref<16x32x32xf32, #tpu.memory_space<vmem>>, vector<1x32x32xf32>
    %59 = vector.shape_cast %58 : vector<1x32x32xf32> to vector<32x32xf32>
    %cst_66 = arith.constant dense<0.000000e+00> : vector<1x32xf32>
    %60 = tpu.matmul %57, %59, %cst_66 {dimension_numbers = #tpu.dot_dimension_numbers<[1], [0], [0], [1], [0, 0, 1, 1], [], []>} : vector<1x32xf32>, vector<32x32xf32>, vector<1x32xf32> -> vector<1x32xf32>
    %61 = arith.addf %56, %60 : vector<1x32xf32>
    %c2_67 = arith.constant 2 : index
    %c0_68 = arith.constant 0 : index
    %62 = vector.load %arg14[%c2_67, %c0_68] : memref<25x32xf32, #tpu.memory_space<vmem>>, vector<1x32xf32>
    %c2_69 = arith.constant 2 : index
    %c0_70 = arith.constant 0 : index
    %c0_71 = arith.constant 0 : index
    %63 = vector.load %arg6[%c2_69, %c0_70, %c0_71] : memref<16x32x32xf32, #tpu.memory_space<vmem>>, vector<1x32x32xf32>
    %64 = vector.shape_cast %63 : vector<1x32x32xf32> to vector<32x32xf32>
    %cst_72 = arith.constant dense<0.000000e+00> : vector<1x32xf32>
    %65 = tpu.matmul %62, %64, %cst_72 {dimension_numbers = #tpu.dot_dimension_numbers<[1], [0], [0], [1], [0, 0, 1, 1], [], []>} : vector<1x32xf32>, vector<32x32xf32>, vector<1x32xf32> -> vector<1x32xf32>
    %66 = arith.addf %61, %65 : vector<1x32xf32>
    %c3_73 = arith.constant 3 : index
    %c0_74 = arith.constant 0 : index
    %67 = vector.load %arg14[%c3_73, %c0_74] : memref<25x32xf32, #tpu.memory_space<vmem>>, vector<1x32xf32>
    %c3_75 = arith.constant 3 : index
    %c0_76 = arith.constant 0 : index
    %c0_77 = arith.constant 0 : index
    %68 = vector.load %arg6[%c3_75, %c0_76, %c0_77] : memref<16x32x32xf32, #tpu.memory_space<vmem>>, vector<1x32x32xf32>
    %69 = vector.shape_cast %68 : vector<1x32x32xf32> to vector<32x32xf32>
    %cst_78 = arith.constant dense<0.000000e+00> : vector<1x32xf32>
    %70 = tpu.matmul %67, %69, %cst_78 {dimension_numbers = #tpu.dot_dimension_numbers<[1], [0], [0], [1], [0, 0, 1, 1], [], []>} : vector<1x32xf32>, vector<32x32xf32>, vector<1x32xf32> -> vector<1x32xf32>
    %71 = arith.addf %66, %70 : vector<1x32xf32>
    %c7_79 = arith.constant 7 : index
    %c0_80 = arith.constant 0 : index
    %72 = vector.load %arg14[%c7_79, %c0_80] : memref<25x32xf32, #tpu.memory_space<vmem>>, vector<1x32xf32>
    %c4 = arith.constant 4 : index
    %c0_81 = arith.constant 0 : index
    %c0_82 = arith.constant 0 : index
    %73 = vector.load %arg6[%c4, %c0_81, %c0_82] : memref<16x32x32xf32, #tpu.memory_space<vmem>>, vector<1x32x32xf32>
    %74 = vector.shape_cast %73 : vector<1x32x32xf32> to vector<32x32xf32>
    %cst_83 = arith.constant dense<0.000000e+00> : vector<1x32xf32>
    %75 = tpu.matmul %72, %74, %cst_83 {dimension_numbers = #tpu.dot_dimension_numbers<[1], [0], [0], [1], [0, 0, 1, 1], [], []>} : vector<1x32xf32>, vector<32x32xf32>, vector<1x32xf32> -> vector<1x32xf32>
    %76 = arith.addf %71, %75 : vector<1x32xf32>
    %c8_84 = arith.constant 8 : index
    %c0_85 = arith.constant 0 : index
    %77 = vector.load %arg14[%c8_84, %c0_85] : memref<25x32xf32, #tpu.memory_space<vmem>>, vector<1x32xf32>
    %c5 = arith.constant 5 : index
    %c0_86 = arith.constant 0 : index
    %c0_87 = arith.constant 0 : index
    %78 = vector.load %arg6[%c5, %c0_86, %c0_87] : memref<16x32x32xf32, #tpu.memory_space<vmem>>, vector<1x32x32xf32>
    %79 = vector.shape_cast %78 : vector<1x32x32xf32> to vector<32x32xf32>
    %cst_88 = arith.constant dense<0.000000e+00> : vector<1x32xf32>
    %80 = tpu.matmul %77, %79, %cst_88 {dimension_numbers = #tpu.dot_dimension_numbers<[1], [0], [0], [1], [0, 0, 1, 1], [], []>} : vector<1x32xf32>, vector<32x32xf32>, vector<1x32xf32> -> vector<1x32xf32>
    %81 = arith.addf %76, %80 : vector<1x32xf32>
    %c9 = arith.constant 9 : index
    %c0_89 = arith.constant 0 : index
    %82 = vector.load %arg14[%c9, %c0_89] : memref<25x32xf32, #tpu.memory_space<vmem>>, vector<1x32xf32>
    %c6 = arith.constant 6 : index
    %c0_90 = arith.constant 0 : index
    %c0_91 = arith.constant 0 : index
    %83 = vector.load %arg6[%c6, %c0_90, %c0_91] : memref<16x32x32xf32, #tpu.memory_space<vmem>>, vector<1x32x32xf32>
    %84 = vector.shape_cast %83 : vector<1x32x32xf32> to vector<32x32xf32>
    %cst_92 = arith.constant dense<0.000000e+00> : vector<1x32xf32>
    %85 = tpu.matmul %82, %84, %cst_92 {dimension_numbers = #tpu.dot_dimension_numbers<[1], [0], [0], [1], [0, 0, 1, 1], [], []>} : vector<1x32xf32>, vector<32x32xf32>, vector<1x32xf32> -> vector<1x32xf32>
    %86 = arith.addf %81, %85 : vector<1x32xf32>
    %c10 = arith.constant 10 : index
    %c0_93 = arith.constant 0 : index
    %87 = vector.load %arg14[%c10, %c0_93] : memref<25x32xf32, #tpu.memory_space<vmem>>, vector<1x32xf32>
    %c7_94 = arith.constant 7 : index
    %c0_95 = arith.constant 0 : index
    %c0_96 = arith.constant 0 : index
    %88 = vector.load %arg6[%c7_94, %c0_95, %c0_96] : memref<16x32x32xf32, #tpu.memory_space<vmem>>, vector<1x32x32xf32>
    %89 = vector.shape_cast %88 : vector<1x32x32xf32> to vector<32x32xf32>
    %cst_97 = arith.constant dense<0.000000e+00> : vector<1x32xf32>
    %90 = tpu.matmul %87, %89, %cst_97 {dimension_numbers = #tpu.dot_dimension_numbers<[1], [0], [0], [1], [0, 0, 1, 1], [], []>} : vector<1x32xf32>, vector<32x32xf32>, vector<1x32xf32> -> vector<1x32xf32>
    %91 = arith.addf %86, %90 : vector<1x32xf32>
    %c14 = arith.constant 14 : index
    %c0_98 = arith.constant 0 : index
    %92 = vector.load %arg14[%c14, %c0_98] : memref<25x32xf32, #tpu.memory_space<vmem>>, vector<1x32xf32>
    %c8_99 = arith.constant 8 : index
    %c0_100 = arith.constant 0 : index
    %c0_101 = arith.constant 0 : index
    %93 = vector.load %arg6[%c8_99, %c0_100, %c0_101] : memref<16x32x32xf32, #tpu.memory_space<vmem>>, vector<1x32x32xf32>
    %94 = vector.shape_cast %93 : vector<1x32x32xf32> to vector<32x32xf32>
    %cst_102 = arith.constant dense<0.000000e+00> : vector<1x32xf32>
    %95 = tpu.matmul %92, %94, %cst_102 {dimension_numbers = #tpu.dot_dimension_numbers<[1], [0], [0], [1], [0, 0, 1, 1], [], []>} : vector<1x32xf32>, vector<32x32xf32>, vector<1x32xf32> -> vector<1x32xf32>
    %96 = arith.addf %91, %95 : vector<1x32xf32>
    %c15 = arith.constant 15 : index
    %c0_103 = arith.constant 0 : index
    %97 = vector.load %arg14[%c15, %c0_103] : memref<25x32xf32, #tpu.memory_space<vmem>>, vector<1x32xf32>
    %c9_104 = arith.constant 9 : index
    %c0_105 = arith.constant 0 : index
    %c0_106 = arith.constant 0 : index
    %98 = vector.load %arg6[%c9_104, %c0_105, %c0_106] : memref<16x32x32xf32, #tpu.memory_space<vmem>>, vector<1x32x32xf32>
    %99 = vector.shape_cast %98 : vector<1x32x32xf32> to vector<32x32xf32>
    %cst_107 = arith.constant dense<0.000000e+00> : vector<1x32xf32>
    %100 = tpu.matmul %97, %99, %cst_107 {dimension_numbers = #tpu.dot_dimension_numbers<[1], [0], [0], [1], [0, 0, 1, 1], [], []>} : vector<1x32xf32>, vector<32x32xf32>, vector<1x32xf32> -> vector<1x32xf32>
    %101 = arith.addf %96, %100 : vector<1x32xf32>
    %c16 = arith.constant 16 : index
    %c0_108 = arith.constant 0 : index
    %102 = vector.load %arg14[%c16, %c0_108] : memref<25x32xf32, #tpu.memory_space<vmem>>, vector<1x32xf32>
    %c10_109 = arith.constant 10 : index
    %c0_110 = arith.constant 0 : index
    %c0_111 = arith.constant 0 : index
    %103 = vector.load %arg6[%c10_109, %c0_110, %c0_111] : memref<16x32x32xf32, #tpu.memory_space<vmem>>, vector<1x32x32xf32>
    %104 = vector.shape_cast %103 : vector<1x32x32xf32> to vector<32x32xf32>
    %cst_112 = arith.constant dense<0.000000e+00> : vector<1x32xf32>
    %105 = tpu.matmul %102, %104, %cst_112 {dimension_numbers = #tpu.dot_dimension_numbers<[1], [0], [0], [1], [0, 0, 1, 1], [], []>} : vector<1x32xf32>, vector<32x32xf32>, vector<1x32xf32> -> vector<1x32xf32>
    %106 = arith.addf %101, %105 : vector<1x32xf32>
    %c17 = arith.constant 17 : index
    %c0_113 = arith.constant 0 : index
    %107 = vector.load %arg14[%c17, %c0_113] : memref<25x32xf32, #tpu.memory_space<vmem>>, vector<1x32xf32>
    %c11 = arith.constant 11 : index
    %c0_114 = arith.constant 0 : index
    %c0_115 = arith.constant 0 : index
    %108 = vector.load %arg6[%c11, %c0_114, %c0_115] : memref<16x32x32xf32, #tpu.memory_space<vmem>>, vector<1x32x32xf32>
    %109 = vector.shape_cast %108 : vector<1x32x32xf32> to vector<32x32xf32>
    %cst_116 = arith.constant dense<0.000000e+00> : vector<1x32xf32>
    %110 = tpu.matmul %107, %109, %cst_116 {dimension_numbers = #tpu.dot_dimension_numbers<[1], [0], [0], [1], [0, 0, 1, 1], [], []>} : vector<1x32xf32>, vector<32x32xf32>, vector<1x32xf32> -> vector<1x32xf32>
    %111 = arith.addf %106, %110 : vector<1x32xf32>
    %c21 = arith.constant 21 : index
    %c0_117 = arith.constant 0 : index
    %112 = vector.load %arg14[%c21, %c0_117] : memref<25x32xf32, #tpu.memory_space<vmem>>, vector<1x32xf32>
    %c12 = arith.constant 12 : index
    %c0_118 = arith.constant 0 : index
    %c0_119 = arith.constant 0 : index
    %113 = vector.load %arg6[%c12, %c0_118, %c0_119] : memref<16x32x32xf32, #tpu.memory_space<vmem>>, vector<1x32x32xf32>
    %114 = vector.shape_cast %113 : vector<1x32x32xf32> to vector<32x32xf32>
    %cst_120 = arith.constant dense<0.000000e+00> : vector<1x32xf32>
    %115 = tpu.matmul %112, %114, %cst_120 {dimension_numbers = #tpu.dot_dimension_numbers<[1], [0], [0], [1], [0, 0, 1, 1], [], []>} : vector<1x32xf32>, vector<32x32xf32>, vector<1x32xf32> -> vector<1x32xf32>
    %116 = arith.addf %111, %115 : vector<1x32xf32>
    %c22 = arith.constant 22 : index
    %c0_121 = arith.constant 0 : index
    %117 = vector.load %arg14[%c22, %c0_121] : memref<25x32xf32, #tpu.memory_space<vmem>>, vector<1x32xf32>
    %c13 = arith.constant 13 : index
    %c0_122 = arith.constant 0 : index
    %c0_123 = arith.constant 0 : index
    %118 = vector.load %arg6[%c13, %c0_122, %c0_123] : memref<16x32x32xf32, #tpu.memory_space<vmem>>, vector<1x32x32xf32>
    %119 = vector.shape_cast %118 : vector<1x32x32xf32> to vector<32x32xf32>
    %cst_124 = arith.constant dense<0.000000e+00> : vector<1x32xf32>
    %120 = tpu.matmul %117, %119, %cst_124 {dimension_numbers = #tpu.dot_dimension_numbers<[1], [0], [0], [1], [0, 0, 1, 1], [], []>} : vector<1x32xf32>, vector<32x32xf32>, vector<1x32xf32> -> vector<1x32xf32>
    %121 = arith.addf %116, %120 : vector<1x32xf32>
    %c23 = arith.constant 23 : index
    %c0_125 = arith.constant 0 : index
    %122 = vector.load %arg14[%c23, %c0_125] : memref<25x32xf32, #tpu.memory_space<vmem>>, vector<1x32xf32>
    %c14_126 = arith.constant 14 : index
    %c0_127 = arith.constant 0 : index
    %c0_128 = arith.constant 0 : index
    %123 = vector.load %arg6[%c14_126, %c0_127, %c0_128] : memref<16x32x32xf32, #tpu.memory_space<vmem>>, vector<1x32x32xf32>
    %124 = vector.shape_cast %123 : vector<1x32x32xf32> to vector<32x32xf32>
    %cst_129 = arith.constant dense<0.000000e+00> : vector<1x32xf32>
    %125 = tpu.matmul %122, %124, %cst_129 {dimension_numbers = #tpu.dot_dimension_numbers<[1], [0], [0], [1], [0, 0, 1, 1], [], []>} : vector<1x32xf32>, vector<32x32xf32>, vector<1x32xf32> -> vector<1x32xf32>
    %126 = arith.addf %121, %125 : vector<1x32xf32>
    %c24 = arith.constant 24 : index
    %c0_130 = arith.constant 0 : index
    %127 = vector.load %arg14[%c24, %c0_130] : memref<25x32xf32, #tpu.memory_space<vmem>>, vector<1x32xf32>
    %c15_131 = arith.constant 15 : index
    %c0_132 = arith.constant 0 : index
    %c0_133 = arith.constant 0 : index
    %128 = vector.load %arg6[%c15_131, %c0_132, %c0_133] : memref<16x32x32xf32, #tpu.memory_space<vmem>>, vector<1x32x32xf32>
    %129 = vector.shape_cast %128 : vector<1x32x32xf32> to vector<32x32xf32>
    %cst_134 = arith.constant dense<0.000000e+00> : vector<1x32xf32>
    %130 = tpu.matmul %127, %129, %cst_134 {dimension_numbers = #tpu.dot_dimension_numbers<[1], [0], [0], [1], [0, 0, 1, 1], [], []>} : vector<1x32xf32>, vector<32x32xf32>, vector<1x32xf32> -> vector<1x32xf32>
    %131 = arith.addf %126, %130 : vector<1x32xf32>
    %cst_135 = arith.constant 0.000000e+00 : f32
    %132 = vector.broadcast %cst_135 : f32 to vector<1x32xf32>
    %133 = arith.maximumf %131, %132 : vector<1x32xf32>
    %c0_136 = arith.constant 0 : index
    %c0_137 = arith.constant 0 : index
    %134 = vector.load %arg8[%c0_136, %c0_137] : memref<32x4xf32, #tpu.memory_space<vmem>>, vector<32x4xf32>
    %cst_138 = arith.constant dense<0.000000e+00> : vector<1x4xf32>
    %135 = tpu.matmul %133, %134, %cst_138 {dimension_numbers = #tpu.dot_dimension_numbers<[1], [0], [0], [1], [0, 0, 1, 1], [], []>} : vector<1x32xf32>, vector<32x4xf32>, vector<1x4xf32> -> vector<1x4xf32>
    %c0_139 = arith.constant 0 : index
    %c0_140 = arith.constant 0 : index
    %136 = vector.load %arg9[%c0_139, %c0_140] : memref<1x4xf32, #tpu.memory_space<vmem>>, vector<1x4xf32>
    %137 = arith.addf %135, %136 : vector<1x4xf32>
    %c0_141 = arith.constant 0 : index
    %c0_142 = arith.constant 0 : index
    %c0_143 = arith.constant 0 : index
    %138 = vector.load %arg10[%c0_141, %c0_142, %c0_143] : memref<1x1x4xf32, #tpu.memory_space<vmem>>, vector<1x1x4xf32>
    %139 = vector.shape_cast %138 : vector<1x1x4xf32> to vector<1x4xf32>
    %140 = vector.shape_cast %137 : vector<1x4xf32> to vector<1x1x4xf32>
    tpu.vector_store %arg10[%c0_141, %c0_142, %c0_143], %140 {strides = array<i32>} : memref<1x1x4xf32, #tpu.memory_space<vmem>>, vector<1x1x4xf32>,
    return
  }
  func.func @transform_0(%arg0: i32) -> (i32, i32, i32) {
    %c0_i32 = arith.constant 0 : i32
    %c0_i32_0 = arith.constant 0 : i32
    %c0_i32_1 = arith.constant 0 : i32
    return %arg0, %c0_i32, %c0_i32_0 : i32, i32, i32
  }
  func.func @transform_1(%arg0: i32) -> (i32, i32) {
    %c0_i32 = arith.constant 0 : i32
    %c0_i32_0 = arith.constant 0 : i32
    %c0_i32_1 = arith.constant 0 : i32
    return %c0_i32, %c0_i32_0 : i32, i32
  }
  func.func @transform_2(%arg0: i32) -> (i32, i32) {
    %c0_i32 = arith.constant 0 : i32
    %c0_i32_0 = arith.constant 0 : i32
    %c0_i32_1 = arith.constant 0 : i32
    return %c0_i32, %c0_i32_0 : i32, i32
  }
  func.func @transform_3(%arg0: i32) -> (i32, i32, i32) {
    %c0_i32 = arith.constant 0 : i32
    %c0_i32_0 = arith.constant 0 : i32
    %c0_i32_1 = arith.constant 0 : i32
    %c0_i32_2 = arith.constant 0 : i32
    return %c0_i32, %c0_i32_0, %c0_i32_1 : i32, i32, i32
  }
  func.func @transform_4(%arg0: i32) -> (i32, i32) {
    %c0_i32 = arith.constant 0 : i32
    %c0_i32_0 = arith.constant 0 : i32
    %c0_i32_1 = arith.constant 0 : i32
    return %c0_i32, %c0_i32_0 : i32, i32
  }
  func.func @transform_5(%arg0: i32) -> (i32, i32, i32) {
    %c0_i32 = arith.constant 0 : i32
    %c0_i32_0 = arith.constant 0 : i32
    %c0_i32_1 = arith.constant 0 : i32
    %c0_i32_2 = arith.constant 0 : i32
    return %c0_i32, %c0_i32_0, %c0_i32_1 : i32, i32, i32
  }
  func.func @transform_6(%arg0: i32) -> (i32, i32) {
    %c0_i32 = arith.constant 0 : i32
    %c0_i32_0 = arith.constant 0 : i32
    %c0_i32_1 = arith.constant 0 : i32
    return %c0_i32, %c0_i32_0 : i32, i32
  }
  func.func @transform_7(%arg0: i32) -> (i32, i32) {
    %c0_i32 = arith.constant 0 : i32
    %c0_i32_0 = arith.constant 0 : i32
    %c0_i32_1 = arith.constant 0 : i32
    return %c0_i32, %c0_i32_0 : i32, i32
  }
  func.func @transform_8(%arg0: i32) -> (i32, i32) {
    %c0_i32 = arith.constant 0 : i32
    %c0_i32_0 = arith.constant 0 : i32
    %c0_i32_1 = arith.constant 0 : i32
    return %c0_i32, %c0_i32_0 : i32, i32
  }
  func.func @transform_9(%arg0: i32) -> (i32, i32, i32) {
    %c0_i32 = arith.constant 0 : i32
    %c0_i32_0 = arith.constant 0 : i32
    %c0_i32_1 = arith.constant 0 : i32
    return %arg0, %c0_i32, %c0_i32_0 : i32, i32, i32
  }
}

</mosaic_0001>

<llo_original>
// kernel: net_forward.1
$region0: #{net_forward.1}
  #allocation0 [shape = 'u32[]', space=smem, size = 0x4, offset = 0x4, fixed_abs, tag = 'smem constant byte address 0x4 - core index']
  #allocation1 [shape = 'u32[144,128]{1,0:T(1,128)}', space=vmem, size = 0x12000, scoped, tag = 'internal scratch']
  #allocation2 [shape = 'f32[49,16]{1,0:T(8,128)}', space=vmem, size = 0x7000, scoped, tag = 'scratch operand']
  #allocation3 [shape = 'f32[41,16]{1,0:T(8,128)}', space=vmem, size = 0x6000, scoped, tag = 'scratch operand']
  #allocation4 [shape = 'f32[33,32]{1,0:T(8,128)}', space=vmem, size = 0x5000, scoped, tag = 'scratch operand']
  #allocation5 [shape = 'f32[25,32]{1,0:T(8,128)}', space=vmem, size = 0x4000, scoped, tag = 'scratch operand']
  %s0 = inlined_call_operand.vmem [shape: f32[2,49,28], index: 0, kind: input, shape index: {}]
  %s1 = inlined_call_operand.vmem [shape: f32[28,16], index: 1, kind: input, shape index: {}]
  %s2 = inlined_call_operand.vmem [shape: f32[1,16], index: 2, kind: input, shape index: {}]
  %s3 = inlined_call_operand.vmem [shape: f32[4,16,32], index: 3, kind: input, shape index: {}]
  %s4 = inlined_call_operand.vmem [shape: f32[1,32], index: 4, kind: input, shape index: {}]
  %s5 = inlined_call_operand.vmem [shape: f32[16,32,32], index: 5, kind: input, shape index: {}]
  %s6 = inlined_call_operand.vmem [shape: f32[1,32], index: 6, kind: input, shape index: {}]
  %s7 = inlined_call_operand.vmem [shape: f32[32,4], index: 7, kind: input, shape index: {}]
  %s8 = inlined_call_operand.vmem [shape: f32[1,4], index: 8, kind: input, shape index: {}]
  %s9 = inlined_call_operand.hbm [shape: f32[2,1,4], index: 9, kind: output, shape index: {}]
  %s10 = sld [smem:[#allocation0]]
  $region69: #{net_forward.1} parent=0
    _
  %s12 = ssub.s32 1, %s10
  %s13 = scalar_select 0, %s12, %s10
  $region1: #{net_forward.1} parent=0
    #allocation6 [shape = 'u8[1024]{0}', space=vmem, size = 0x400, scoped, tag = 'output window, operand 0']
    #allocation7 [shape = 's32[2]{0}', space=sflag, size = 0x8, scoped, tag = 'scoped memory for net_forward.1']
    %14 = vsyncpa [#allocation7], 0
    %s15 = scalar_lea.sflag [#allocation7], 1
    %16 = vsyncpa %s15, 0
    loop: start=0, step=1, limit=4
    $region2: #{net_forward.1} parent=1 // loop_pre_header
      _
    $region3: #{net_forward.1} parent=1 // loop_header
      %s18 = sphi 0, %s22
      %p19 = scmp.ge.s32.totalorder %s18, 4
      %s28 = sphi 0, %s30
      %s31 = sphi 0, %s28
      %s32 = sphi 0, %s31
      %s48 = sphi 0, %s32
      %s52 = sphi 0, %s52
      %s54 = sphi 0, %s52
      %s55 = sphi 0, %s54
      %s69 = sphi 0, %s55
      %s73 = sphi 0, %s73
      %s75 = sphi 0, %s73
      %s76 = sphi 0, %s75
      %s90 = sphi 0, %s76
      %s94 = sphi 0, %s94
      %s96 = sphi 0, %s94
      %s97 = sphi 0, %s96
      %s111 = sphi 0, %s97
      %s115 = sphi 0, %s115
      %s117 = sphi 0, %s115
      %s118 = sphi 0, %s117
      %s132 = sphi 0, %s118
      %s136 = sphi 0, %s136
      %s138 = sphi 0, %s136
      %s139 = sphi 0, %s138
      %s153 = sphi 0, %s139
      %s157 = sphi 0, %s157
      %s159 = sphi 0, %s157
      %s160 = sphi 0, %s159
      %s174 = sphi 0, %s160
      %s178 = sphi 0, %s178
      %s180 = sphi 0, %s178
      %s181 = sphi 0, %s180
      %s195 = sphi 0, %s181
      %s199 = sphi 0, %s199
      %s201 = sphi 0, %s199
      %s202 = sphi 0, %s201
      %s216 = sphi 0, %s202
      %s222 = sphi 0, %s224
      %s225 = sphi 0, %s222
      %s226 = sphi 0, %s225
      %s242 = sphi 0, %s226
    $region4: #{net_forward.1} parent=1 // loop_header_branch
      %21 = sbr.rel (%p19) target = $region8
    $region5: #{net_forward.1} parent=1 // loop_body
      %s23 = ssub.s32 %s18, 1
      %s24 = ssub.s32 %s18, 2
      %s25 = sadd.s32 %s18, 1
      %s26 = ssub.s32 %s18, %s25
      %p27 = scmp.eq.s32.totalorder %s26, 0
      %s29 = sadd.s32 %s28, 1
      %s30 = scalar_select %p27, %s28, %s29
      %p33 = pneg %p27
      %p34 = scmp.eq.s32.totalorder %s18, 1
      %p35 = por %p33, %p34
      %p36 = scmp.ne.s32.totalorder %s28, %s31
      %p37 = scmp.eq.s32.totalorder %s18, 0
      %p38 = por %p36, %p37
      %p39 = scmp.ne.s32.totalorder %s28, %s31
      %p40 = scmp.eq.s32.totalorder %s23, 1
      %p41 = por %p39, %p40
      %p42 = scmp.ne.s32.totalorder %s31, %s32
      %p43 = scmp.eq.s32.totalorder %s23, 0
      %p44 = por %p42, %p43
      %p45 = scmp.ne.s32.totalorder %s31, %s32
      %p46 = scmp.eq.s32.totalorder %s24, 1
      %p47 = por %p45, %p46
      %p49 = scmp.ne.s32.totalorder %s32, %s48
      %p50 = scmp.eq.s32.totalorder %s24, 0
      %p51 = por %p49, %p50
      %s53 = sadd.s32 %s52, 1
      %p56 = scmp.eq.s32.totalorder %s18, 1
      %p57 = scmp.ne.s32.totalorder %s52, %s54
      %p58 = scmp.eq.s32.totalorder %s18, 0
      %p59 = por %p57, %p58
      %p60 = scmp.ne.s32.totalorder %s52, %s54
      %p61 = scmp.eq.s32.totalorder %s23, 1
      %p62 = por %p60, %p61
      %p63 = scmp.ne.s32.totalorder %s54, %s55
      %p64 = scmp.eq.s32.totalorder %s23, 0
      %p65 = por %p63, %p64
      %p66 = scmp.ne.s32.totalorder %s54, %s55
      %p67 = scmp.eq.s32.totalorder %s24, 1
      %p68 = por %p66, %p67
      %p70 = scmp.ne.s32.totalorder %s55, %s69
      %p71 = scmp.eq.s32.totalorder %s24, 0
      %p72 = por %p70, %p71
      %s74 = sadd.s32 %s73, 1
      %p77 = scmp.eq.s32.totalorder %s18, 1
      %p78 = scmp.ne.s32.totalorder %s73, %s75
      %p79 = scmp.eq.s32.totalorder %s18, 0
      %p80 = por %p78, %p79
      %p81 = scmp.ne.s32.totalorder %s73, %s75
      %p82 = scmp.eq.s32.totalorder %s23, 1
      %p83 = por %p81, %p82
      %p84 = scmp.ne.s32.totalorder %s75, %s76
      %p85 = scmp.eq.s32.totalorder %s23, 0
      %p86 = por %p84, %p85
      %p87 = scmp.ne.s32.totalorder %s75, %s76
      %p88 = scmp.eq.s32.totalorder %s24, 1
      %p89 = por %p87, %p88
      %p91 = scmp.ne.s32.totalorder %s76, %s90
      %p92 = scmp.eq.s32.totalorder %s24, 0
      %p93 = por %p91, %p92
      %s95 = sadd.s32 %s94, 1
      %p98 = scmp.eq.s32.totalorder %s18, 1
      %p99 = scmp.ne.s32.totalorder %s94, %s96
      %p100 = scmp.eq.s32.totalorder %s18, 0
      %p101 = por %p99, %p100
      %p102 = scmp.ne.s32.totalorder %s94, %s96
      %p103 = scmp.eq.s32.totalorder %s23, 1
      %p104 = por %p102, %p103
      %p105 = scmp.ne.s32.totalorder %s96, %s97
      %p106 = scmp.eq.s32.totalorder %s23, 0
      %p107 = por %p105, %p106
      %p108 = scmp.ne.s32.totalorder %s96, %s97
      %p109 = scmp.eq.s32.totalorder %s24, 1
      %p110 = por %p108, %p109
      %p112 = scmp.ne.s32.totalorder %s97, %s111
      %p113 = scmp.eq.s32.totalorder %s24, 0
      %p114 = por %p112, %p113
      %s116 = sadd.s32 %s115, 1
      %p119 = scmp.eq.s32.totalorder %s18, 1
      %p120 = scmp.ne.s32.totalorder %s115, %s117
      %p121 = scmp.eq.s32.totalorder %s18, 0
      %p122 = por %p120, %p121
      %p123 = scmp.ne.s32.totalorder %s115, %s117
      %p124 = scmp.eq.s32.totalorder %s23, 1
      %p125 = por %p123, %p124
      %p126 = scmp.ne.s32.totalorder %s117, %s118
      %p127 = scmp.eq.s32.totalorder %s23, 0
      %p128 = por %p126, %p127
      %p129 = scmp.ne.s32.totalorder %s117, %s118
      %p130 = scmp.eq.s32.totalorder %s24, 1
      %p131 = por %p129, %p130
      %p133 = scmp.ne.s32.totalorder %s118, %s132
      %p134 = scmp.eq.s32.totalorder %s24, 0
      %p135 = por %p133, %p134
      %s137 = sadd.s32 %s136, 1
      %p140 = scmp.eq.s32.totalorder %s18, 1
      %p141 = scmp.ne.s32.totalorder %s136, %s138
      %p142 = scmp.eq.s32.totalorder %s18, 0
      %p143 = por %p141, %p142
      %p144 = scmp.ne.s32.totalorder %s136, %s138
      %p145 = scmp.eq.s32.totalorder %s23, 1
      %p146 = por %p144, %p145
      %p147 = scmp.ne.s32.totalorder %s138, %s139
      %p148 = scmp.eq.s32.totalorder %s23, 0
      %p149 = por %p147, %p148
      %p150 = scmp.ne.s32.totalorder %s138, %s139
      %p151 = scmp.eq.s32.totalorder %s24, 1
      %p152 = por %p150, %p151
      %p154 = scmp.ne.s32.totalorder %s139, %s153
      %p155 = scmp.eq.s32.totalorder %s24, 0
      %p156 = por %p154, %p155
      %s158 = sadd.s32 %s157, 1
      %p161 = scmp.eq.s32.totalorder %s18, 1
      %p162 = scmp.ne.s32.totalorder %s157, %s159
      %p163 = scmp.eq.s32.totalorder %s18, 0
      %p164 = por %p162, %p163
      %p165 = scmp.ne.s32.totalorder %s157, %s159
      %p166 = scmp.eq.s32.totalorder %s23, 1
      %p167 = por %p165, %p166
      %p168 = scmp.ne.s32.totalorder %s159, %s160
      %p169 = scmp.eq.s32.totalorder %s23, 0
      %p170 = por %p168, %p169
      %p171 = scmp.ne.s32.totalorder %s159, %s160
      %p172 = scmp.eq.s32.totalorder %s24, 1
      %p173 = por %p171, %p172
      %p175 = scmp.ne.s32.totalorder %s160, %s174
      %p176 = scmp.eq.s32.totalorder %s24, 0
      %p177 = por %p175, %p176
      %s179 = sadd.s32 %s178, 1
      %p182 = scmp.eq.s32.totalorder %s18, 1
      %p183 = scmp.ne.s32.totalorder %s178, %s180
      %p184 = scmp.eq.s32.totalorder %s18, 0
      %p185 = por %p183, %p184
      %p186 = scmp.ne.s32.totalorder %s178, %s180
      %p187 = scmp.eq.s32.totalorder %s23, 1
      %p188 = por %p186, %p187
      %p189 = scmp.ne.s32.totalorder %s180, %s181
      %p190 = scmp.eq.s32.totalorder %s23, 0
      %p191 = por %p189, %p190
      %p192 = scmp.ne.s32.totalorder %s180, %s181
      %p193 = scmp.eq.s32.totalorder %s24, 1
      %p194 = por %p192, %p193
      %p196 = scmp.ne.s32.totalorder %s181, %s195
      %p197 = scmp.eq.s32.totalorder %s24, 0
      %p198 = por %p196, %p197
      %s200 = sadd.s32 %s199, 1
      %p203 = scmp.eq.s32.totalorder %s18, 1
      %p204 = scmp.ne.s32.totalorder %s199, %s201
      %p205 = scmp.eq.s32.totalorder %s18, 0
      %p206 = por %p204, %p205
      %p207 = scmp.ne.s32.totalorder %s199, %s201
      %p208 = scmp.eq.s32.totalorder %s23, 1
      %p209 = por %p207, %p208
      %p210 = scmp.ne.s32.totalorder %s201, %s202
      %p211 = scmp.eq.s32.totalorder %s23, 0
      %p212 = por %p210, %p211
      %p213 = scmp.ne.s32.totalorder %s201, %s202
      %p214 = scmp.eq.s32.totalorder %s24, 1
      %p215 = por %p213, %p214
      %p217 = scmp.ne.s32.totalorder %s202, %s216
      %p218 = scmp.eq.s32.totalorder %s24, 0
      %p219 = por %p217, %p218
      %s220 = ssub.s32 %s18, %s25
      %p221 = scmp.eq.s32.totalorder %s220, 0
      %s223 = sadd.s32 %s222, 1
      %s224 = scalar_select %p221, %s222, %s223
      %p227 = pneg %p221
      %p228 = scmp.eq.s32.totalorder %s18, 1
      %p229 = por %p227, %p228
      %p230 = scmp.ne.s32.totalorder %s222, %s225
      %p231 = scmp.eq.s32.totalorder %s18, 0
      %p232 = por %p230, %p231
      %p233 = scmp.ne.s32.totalorder %s222, %s225
      %p234 = scmp.eq.s32.totalorder %s23, 1
      %p235 = por %p233, %p234
      %p236 = scmp.ne.s32.totalorder %s225, %s226
      %p237 = scmp.eq.s32.totalorder %s23, 0
      %p238 = por %p236, %p237
      %p239 = scmp.ne.s32.totalorder %s225, %s226
      %p240 = scmp.eq.s32.totalorder %s24, 1
      %p241 = por %p239, %p240
      %p243 = scmp.ne.s32.totalorder %s226, %s242
      %p244 = scmp.eq.s32.totalorder %s24, 0
      %p245 = por %p243, %p244
      %p246 = scmp.le.s32.totalorder 1, %s18
      %p247 = scmp.lt.s32.totalorder %s18, 3
      %p248 = pnand %p246, %p247
      %p249 = pneg %p248
      // Predicated region
      $region9: #{net_forward.1} parent=5 // pred_check
        _
      $region10: #{net_forward.1} parent=5 // pred_check_branch
        %251 = sbr.rel (%p248) target = $region12
      $region11: #{net_forward.1} parent=5 // pred_region
        %s252 = ssub.s32 %s18, 1
        // Predicated region
        $region13: #{net_forward.1} parent=11 // pred_check
          %p253 = pneg %p65
        $region14: #{net_forward.1} parent=11 // pred_check_branch
          %255 = sbr.rel (%p253) target = $region16
        $region15: #{net_forward.1} parent=11 // pred_region
          _
        $region16: #{net_forward.1} parent=11 // pred_fallthru
          _
        // Predicated region
        $region17: #{net_forward.1} parent=11 // pred_check
          %p256 = pneg %p86
        $region18: #{net_forward.1} parent=11 // pred_check_branch
          %258 = sbr.rel (%p256) target = $region20
        $region19: #{net_forward.1} parent=11 // pred_region
          _
        $region20: #{net_forward.1} parent=11 // pred_fallthru
          _
        // Predicated region
        $region21: #{net_forward.1} parent=11 // pred_check
          %p259 = pneg %p107
        $region22: #{net_forward.1} parent=11 // pred_check_branch
          %261 = sbr.rel (%p259) target = $region24
        $region23: #{net_forward.1} parent=11 // pred_region
          _
        $region24: #{net_forward.1} parent=11 // pred_fallthru
          _
        // Predicated region
        $region25: #{net_forward.1} parent=11 // pred_check
          %p262 = pneg %p128
        $region26: #{net_forward.1} parent=11 // pred_check_branch
          %264 = sbr.rel (%p262) target = $region28
        $region27: #{net_forward.1} parent=11 // pred_region
          _
        $region28: #{net_forward.1} parent=11 // pred_fallthru
          _
        // Predicated region
        $region29: #{net_forward.1} parent=11 // pred_check
          %p265 = pneg %p149
        $region30: #{net_forward.1} parent=11 // pred_check_branch
          %267 = sbr.rel (%p265) target = $region32
        $region31: #{net_forward.1} parent=11 // pred_region
          _
        $region32: #{net_forward.1} parent=11 // pred_fallthru
          _
        // Predicated region
        $region33: #{net_forward.1} parent=11 // pred_check
          %p268 = pneg %p170
        $region34: #{net_forward.1} parent=11 // pred_check_branch
          %270 = sbr.rel (%p268) target = $region36
        $region35: #{net_forward.1} parent=11 // pred_region
          _
        $region36: #{net_forward.1} parent=11 // pred_fallthru
          _
        // Predicated region
        $region37: #{net_forward.1} parent=11 // pred_check
          %p271 = pneg %p191
        $region38: #{net_forward.1} parent=11 // pred_check_branch
          %273 = sbr.rel (%p271) target = $region40
        $region39: #{net_forward.1} parent=11 // pred_region
          _
        $region40: #{net_forward.1} parent=11 // pred_fallthru
          _
        // Predicated region
        $region41: #{net_forward.1} parent=11 // pred_check
          %p274 = pneg %p212
        $region42: #{net_forward.1} parent=11 // pred_check_branch
          %276 = sbr.rel (%p274) target = $region44
        $region43: #{net_forward.1} parent=11 // pred_region
          _
        $region44: #{net_forward.1} parent=11 // pred_fallthru
          _
      $region12: #{net_forward.1} parent=5 // pred_fallthru
        _
      %p277 = scmp.lt.s32.totalorder %s18, 2
      // Predicated region
      $region45: #{net_forward.1} parent=5 // pred_check
        %p278 = pneg %p277
      $region46: #{net_forward.1} parent=5 // pred_check_branch
        %280 = sbr.rel (%p278) target = $region48
      $region47: #{net_forward.1} parent=5 // pred_region
        // Predicated region
        $region49: #{net_forward.1} parent=47 // pred_check
          %p281 = pneg %p38
        $region50: #{net_forward.1} parent=47 // pred_check_branch
          %283 = sbr.rel (%p281) target = $region52
        $region51: #{net_forward.1} parent=47 // pred_region
          %p284 = scmp.lt.s32.totalorder %s18, 1
          %s285 = scalar_select %p284, %s18, 1
          %s286 = smul.addr %s285, 7
          %s287 = smul.addr %s286, 8
          %s288 = scalar_lea.vmem %s0, %s287
        $region52: #{net_forward.1} parent=47 // pred_fallthru
          _
      $region48: #{net_forward.1} parent=5 // pred_fallthru
        _
      %p289 = scmp.le.s32.totalorder 1, %s18
      %p290 = scmp.lt.s32.totalorder %s18, 3
      %p291 = pnand %p289, %p290
      %p292 = pneg %p291
      // Predicated region
      $region53: #{net_forward.1} parent=5 // pred_check
        _
      $region54: #{net_forward.1} parent=5 // pred_check_branch
        %294 = sbr.rel (%p291) target = $region56
      $region55: #{net_forward.1} parent=5 // pred_region
        %s295 = ssub.s32 %s18, 1
        %p296 = scmp.lt.s32.totalorder %s23, 1
        %s297 = scalar_select %p296, %s23, 1
        %s298 = smul.addr %s297, 7
        %s299 = smul.addr %s298, 8
        %s300 = scalar_lea.vmem %s0, %s299
        %p301 = pneg %p44
        %p302 = pneg %p41
        %p303 = pneg %p65
        %p304 = pneg %p62
        %p305 = pneg %p86
        %p306 = pneg %p83
        %p307 = pneg %p107
        %p308 = pneg %p104
        %p309 = pneg %p128
        %p310 = pneg %p125
        %p311 = pneg %p149
        %p312 = pneg %p146
        %p313 = pneg %p170
        %p314 = pneg %p167
        %p315 = pneg %p191
        %p316 = pneg %p188
        %p317 = pneg %p212
        %p318 = pneg %p209
        %p319 = pneg %p238
        %p320 = pneg %p235
        %s321 = sand.u32 %s225, 1
        %s322 = scalar_lea.sflag [#allocation7], %s321
        %s323 = sand.u32 %s225, 1
        %s324 = scalar_lea.vmem [#allocation6], %s323
        %p325 = scmp.lt.s32.totalorder %s23, 1
        %s326 = scalar_select %p325, %s23, 1
        %s327 = smul.addr %s326, 7
        %s328 = smul.addr %s327, 8
        %s329 = scalar_lea.vmem %s0, %s328
        %v330 = vld [vmem:[%s329] sm:$0xff]
        %v331 = vld [vmem:[%s329 + $0x8] sm:$0xff]
        %v332 = vld [vmem:[%s329 + $0x10] sm:$0xff]
        %v333 = vld [vmem:[%s329 + $0x18] sm:$0xff]
        %v334 = vld [vmem:[%s329 + $0x20] sm:$0xff]
        %v335 = vld [vmem:[%s329 + $0x28] sm:$0xff]
        %v336 = vld [vmem:[%s329 + $0x30] sm:$0x1]
        %v337 = vld [vmem:[%s1] sm:$0xff]
        %v338 = vld [vmem:[%s1 + $0x8] sm:$0xff]
        %v339 = vld [vmem:[%s1 + $0x10] sm:$0xff]
        %v340 = vld [vmem:[%s1 + $0x18] sm:$0xf]
        %v341 = vld [vmem:[%s2] sm:$0x1]
        %v343 = vlaneseq
        %v344 = vshrl.u32 %v343, 7
        %v345 = vsub.s32 0, %v344
        %v346 = vrot.slane %v341, %v345
        %vm348 = vcmask 228352
        %v350 = vsel %vm348, %v330, 0
        %v353 = vsel %vm348, %v331, 0
        %v356 = vsel %vm348, %v332, 0
        %v359 = vsel %vm348, %v333, 0
        %v362 = vsel %vm348, %v334, 0
        %v365 = vsel %vm348, %v335, 0
        %v368 = vsel %vm348, %v336, 0
        %vm370 = vcmask 1043456
        %v372 = vsel %vm370, %v340, 0
        %374 = vmatprep.subr.mxu0 0.0
        %375 = vmatpush1.msra.mxu0 %v337
        %376 = vmatprep.subr.mxu0 0.0
        %377 = vmatpush1.msra.mxu0 %v338
        %378 = vmatprep.subr.mxu0 0.0
        %379 = vmatpush1.msra.mxu0 %v339
        %380 = vmatprep.subr.mxu0 0.0
        %381 = vmatpush1.msra.mxu0 %v372
        %382 = vmatprep.subr.mxu0 0.0
        %383 = vmatpush1.msra.mxu0 0.0
        %384 = vmatprep.subr.mxu0 0.0
        %385 = vmatpush1.msra.mxu0 0.0
        %386 = vmatprep.subr.mxu0 0.0
        %387 = vmatpush1.msra.mxu0 0.0
        %388 = vmatprep.subr.mxu0 0.0
        %389 = vmatpush1.msra.mxu0 0.0
        %390 = vmatprep.subr.mxu0 0.0
        %391 = vmatpush1.msra.mxu0 0.0
        %392 = vmatprep.subr.mxu0 0.0
        %393 = vmatpush1.msra.mxu0 0.0
        %394 = vmatprep.subr.mxu0 0.0
        %395 = vmatpush1.msra.mxu0 0.0
        %396 = vmatprep.subr.mxu0 0.0
        %397 = vmatpush1.msra.mxu0 0.0
        %398 = vmatprep.subr.mxu0 0.0
        %399 = vmatpush1.msra.mxu0 0.0
        %400 = vmatprep.subr.mxu0 0.0
        %401 = vmatpush1.msra.mxu0 0.0
        %402 = vmatprep.subr.mxu0 0.0
        %403 = vmatpush1.msra.mxu0 0.0
        %404 = vmatprep.subr.mxu0 0.0
        %405 = vmatpush1.msra.mxu0 0.0
        %406 = vmatprep.subr.mxu0 0.0
        %407 = vmatpush1.msra.mxu0 0.0
        %408 = vmatprep.subr.mxu0 0.0
        %409 = vmatpush1.msra.mxu0 0.0
        %410 = vmatprep.subr.mxu0 0.0
        %411 = vmatpush1.msra.mxu0 0.0
        %412 = vmatprep.subr.mxu0 0.0
        %413 = vmatpush1.msra.mxu0 0.0
        %414 = vmatprep.subr.mxu0 0.0
        %415 = vmatpush1.msra.mxu0 0.0
        %416 = vmatprep.subr.mxu0 0.0
        %417 = vmatpush1.msra.mxu0 0.0
        %418 = vmatprep.subr.mxu0 0.0
        %419 = vmatpush1.msra.mxu0 0.0
        %420 = vmatprep.subr.mxu0 0.0
        %421 = vmatpush1.msra.mxu0 0.0
        %422 = vmatprep.subr.mxu0 0.0
        %423 = vmatpush1.msra.mxu0 0.0
        %424 = vmatprep.subr.mxu0 0.0
        %425 = vmatpush1.msra.mxu0 0.0
        %426 = vmatprep.subr.mxu0 0.0
        %427 = vmatpush1.msra.mxu0 0.0
        %428 = vmatprep.subr.mxu0 0.0
        %429 = vmatpush1.msra.mxu0 0.0
        %430 = vmatprep.subr.mxu0 0.0
        %431 = vmatpush1.msra.mxu0 0.0
        %432 = vmatprep.subr.mxu0 0.0
        %433 = vmatpush1.msra.mxu0 0.0
        %434 = vmatprep.subr.mxu0 0.0
        %435 = vmatpush1.msra.mxu0 0.0
        %436 = vmatprep.subr.mxu0 0.0
        %437 = vmatpush1.msra.mxu0 0.0
        %438 = vmatprep.mubr.f32.mxu0 0.0
        %439 = vmatmul.mubr.f32.gmra.mrb[0].mxu0 %v350
        %v440 = vpop.f32.mrb[0].mxu0
        %v441 = vadd.f32 %v346, %v440
        %v442 = vpop.f32.mrb[0].mxu0
        %443 = vmatprep.mubr.f32.mxu0 0.0
        %444 = vmatmul.mubr.f32.gmra.mrb[0].mxu0 %v353
        %v445 = vpop.f32.mrb[0].mxu0
        %v446 = vadd.f32 %v346, %v445
        %v447 = vpop.f32.mrb[0].mxu0
        %448 = vmatprep.mubr.f32.mxu0 0.0
        %449 = vmatmul.mubr.f32.gmra.mrb[0].mxu0 %v356
        %v450 = vpop.f32.mrb[0].mxu0
        %v451 = vadd.f32 %v346, %v450
        %v452 = vpop.f32.mrb[0].mxu0
        %453 = vmatprep.mubr.f32.mxu0 0.0
        %454 = vmatmul.mubr.f32.gmra.mrb[0].mxu0 %v359
        %v455 = vpop.f32.mrb[0].mxu0
        %v456 = vadd.f32 %v346, %v455
        %v457 = vpop.f32.mrb[0].mxu0
        %458 = vmatprep.mubr.f32.mxu0 0.0
        %459 = vmatmul.mubr.f32.gmra.mrb[0].mxu0 %v362
        %v460 = vpop.f32.mrb[0].mxu0
        %v461 = vadd.f32 %v346, %v460
        %v462 = vpop.f32.mrb[0].mxu0
        %463 = vmatprep.mubr.f32.mxu0 0.0
        %464 = vmatmul.mubr.f32.gmra.mrb[0].mxu0 %v365
        %v465 = vpop.f32.mrb[0].mxu0
        %v466 = vadd.f32 %v346, %v465
        %v467 = vpop.f32.mrb[0].mxu0
        %468 = vmatprep.mubr.f32.mxu0 0.0
        %469 = vmatmul.mubr.f32.gmra.mrb[0].mxu0 %v368
        %v470 = vpop.f32.mrb[0].mxu0
        %v471 = vadd.f32 %v346, %v470
        %v472 = vpop.f32.mrb[0].mxu0
        %473 = vdwg.mxu0
        %v474 = vmax.f32 %v441, 0.0
        %v475 = vmax.f32 %v446, 0.0
        %v476 = vmax.f32 %v451, 0.0
        %v477 = vmax.f32 %v456, 0.0
        %v478 = vmax.f32 %v461, 0.0
        %v479 = vmax.f32 %v466, 0.0
        %v480 = vmax.f32 %v471, 0.0
        %vm481 = vcmask 130048
        %482 = vst.msk [vmem:[#allocation2] sm:$0xff] %vm481, %v474
        %483 = vst.msk [vmem:[#allocation2 + $0x8] sm:$0xff] %vm481, %v475
        %484 = vst.msk [vmem:[#allocation2 + $0x10] sm:$0xff] %vm481, %v476
        %485 = vst.msk [vmem:[#allocation2 + $0x18] sm:$0xff] %vm481, %v477
        %486 = vst.msk [vmem:[#allocation2 + $0x20] sm:$0xff] %vm481, %v478
        %487 = vst.msk [vmem:[#allocation2 + $0x28] sm:$0xff] %vm481, %v479
        %vm488 = vcmask 122880
        %489 = vst.msk [vmem:[#allocation2 + $0x30] sm:$0x1] %vm488, %v480
        %v490 = vld [vmem:[#allocation2] sm:$0xff]
        %v491 = vld [vmem:[#allocation2 + $0x8] sm:$0xff]
        %v492 = vld [vmem:[#allocation2 + $0x10] sm:$0xff]
        %v493 = vld [vmem:[#allocation2 + $0x18] sm:$0xff]
        %v494 = vld [vmem:[#allocation2 + $0x20] sm:$0xff]
        %v495 = vld [vmem:[#allocation2 + $0x28] sm:$0x1]
        %v496 = vld [vmem:[#allocation2 + $0x1] sm:$0xff]
        %v497 = vld [vmem:[#allocation2 + $0x9] sm:$0xff]
        %v498 = vld [vmem:[#allocation2 + $0x11] sm:$0xff]
        %v499 = vld [vmem:[#allocation2 + $0x19] sm:$0xff]
        %v500 = vld [vmem:[#allocation2 + $0x21] sm:$0xff]
        %v501 = vld [vmem:[#allocation2 + $0x29] sm:$0x1]
        %v502 = vmax.f32 %v490, %v496
        %v503 = vmax.f32 %v491, %v497
        %v504 = vmax.f32 %v492, %v498
        %v505 = vmax.f32 %v493, %v499
        %v506 = vmax.f32 %v494, %v500
        %v507 = vmax.f32 %v495, %v501
        %v508 = vld [vmem:[#allocation2 + $0x7] sm:$0xff]
        %v509 = vld [vmem:[#allocation2 + $0xf] sm:$0xff]
        %v510 = vld [vmem:[#allocation2 + $0x17] sm:$0xff]
        %v511 = vld [vmem:[#allocation2 + $0x1f] sm:$0xff]
        %v512 = vld [vmem:[#allocation2 + $0x27] sm:$0xff]
        %v513 = vld [vmem:[#allocation2 + $0x2f] sm:$0x1]
        %v514 = vld [vmem:[#allocation2 + $0x28] sm:$0xff]
        %v515 = vld [vmem:[#allocation2 + $0x30] sm:$0x1]
        %v516 = vmax.f32 %v508, %v491
        %v517 = vmax.f32 %v509, %v492
        %v518 = vmax.f32 %v510, %v493
        %v519 = vmax.f32 %v511, %v494
        %v520 = vmax.f32 %v512, %v514
        %v521 = vmax.f32 %v513, %v515
        %v522 = vmax.f32 %v502, %v516
        %v523 = vmax.f32 %v503, %v517
        %v524 = vmax.f32 %v504, %v518
        %v525 = vmax.f32 %v505, %v519
        %v526 = vmax.f32 %v506, %v520
        %v527 = vmax.f32 %v507, %v521
        %528 = vst.msk [vmem:[#allocation3] sm:$0xff] %vm481, %v522
        %529 = vst.msk [vmem:[#allocation3 + $0x8] sm:$0xff] %vm481, %v523
        %530 = vst.msk [vmem:[#allocation3 + $0x10] sm:$0xff] %vm481, %v524
        %531 = vst.msk [vmem:[#allocation3 + $0x18] sm:$0xff] %vm481, %v525
        %532 = vst.msk [vmem:[#allocation3 + $0x20] sm:$0xff] %vm481, %v526
        %533 = vst.msk [vmem:[#allocation3 + $0x28] sm:$0x1] %vm488, %v527
        %v534 = vld [vmem:[#allocation3] sm:$0xff]
        %v535 = vld [vmem:[#allocation3 + $0x8] sm:$0xff]
        %v536 = vld [vmem:[#allocation3 + $0x10] sm:$0xff]
        %v537 = vld [vmem:[#allocation3 + $0x18] sm:$0xff]
        %v538 = vld [vmem:[#allocation3 + $0x20] sm:$0x1]
        %v539 = vld [vmem:[%s3] sm:$0xff]
        %v540 = vld [vmem:[%s3 + $0x8] sm:$0xff]
        %v541 = vld [vmem:[#allocation3 + $0x1] sm:$0xff]
        %v542 = vld [vmem:[#allocation3 + $0x9] sm:$0xff]
        %v543 = vld [vmem:[#allocation3 + $0x11] sm:$0xff]
        %v544 = vld [vmem:[#allocation3 + $0x19] sm:$0xff]
        %v545 = vld [vmem:[#allocation3 + $0x21] sm:$0x1]
        %s546 = scalar_lea.vmem %s3, 16
        %v547 = vld [vmem:[%s546] sm:$0xff]
        %v548 = vld [vmem:[%s546 + $0x8] sm:$0xff]
        %v550 = vsel %vm481, %v541, 0
        %v553 = vsel %vm481, %v542, 0
        %v556 = vsel %vm481, %v543, 0
        %v559 = vsel %vm481, %v544, 0
        %v562 = vsel %vm481, %v545, 0
        %564 = vmatprep.subr.mxu0 0.0
        %565 = vmatpush1.msra.mxu0 %v547
        %566 = vmatprep.subr.mxu0 0.0
        %567 = vmatpush1.msra.mxu0 %v548
        %568 = vmatprep.subr.mxu0 0.0
        %569 = vmatpush1.msra.mxu0 0.0
        %570 = vmatprep.subr.mxu0 0.0
        %571 = vmatpush1.msra.mxu0 0.0
        %572 = vmatprep.subr.mxu0 0.0
        %573 = vmatpush1.msra.mxu0 0.0
        %574 = vmatprep.subr.mxu0 0.0
        %575 = vmatpush1.msra.mxu0 0.0
        %576 = vmatprep.subr.mxu0 0.0
        %577 = vmatpush1.msra.mxu0 0.0
        %578 = vmatprep.subr.mxu0 0.0
        %579 = vmatpush1.msra.mxu0 0.0
        %580 = vmatprep.subr.mxu0 0.0
        %581 = vmatpush1.msra.mxu0 0.0
        %582 = vmatprep.subr.mxu0 0.0
        %583 = vmatpush1.msra.mxu0 0.0
        %584 = vmatprep.subr.mxu0 0.0
        %585 = vmatpush1.msra.mxu0 0.0
        %586 = vmatprep.subr.mxu0 0.0
        %587 = vmatpush1.msra.mxu0 0.0
        %588 = vmatprep.subr.mxu0 0.0
        %589 = vmatpush1.msra.mxu0 0.0
        %590 = vmatprep.subr.mxu0 0.0
        %591 = vmatpush1.msra.mxu0 0.0
        %592 = vmatprep.subr.mxu0 0.0
        %593 = vmatpush1.msra.mxu0 0.0
        %594 = vmatprep.subr.mxu0 0.0
        %595 = vmatpush1.msra.mxu0 0.0
        %596 = vmatprep.subr.mxu0 0.0
        %597 = vmatpush1.msra.mxu0 0.0
        %598 = vmatprep.subr.mxu0 0.0
        %599 = vmatpush1.msra.mxu0 0.0
        %600 = vmatprep.subr.mxu0 0.0
        %601 = vmatpush1.msra.mxu0 0.0
        %602 = vmatprep.subr.mxu0 0.0
        %603 = vmatpush1.msra.mxu0 0.0
        %604 = vmatprep.subr.mxu0 0.0
        %605 = vmatpush1.msra.mxu0 0.0
        %606 = vmatprep.subr.mxu0 0.0
        %607 = vmatpush1.msra.mxu0 0.0
        %608 = vmatprep.subr.mxu0 0.0
        %609 = vmatpush1.msra.mxu0 0.0
        %610 = vmatprep.subr.mxu0 0.0
        %611 = vmatpush1.msra.mxu0 0.0
        %612 = vmatprep.subr.mxu0 0.0
        %613 = vmatpush1.msra.mxu0 0.0
        %614 = vmatprep.subr.mxu0 0.0
        %615 = vmatpush1.msra.mxu0 0.0
        %616 = vmatprep.subr.mxu0 0.0
        %617 = vmatpush1.msra.mxu0 0.0
        %618 = vmatprep.subr.mxu0 0.0
        %619 = vmatpush1.msra.mxu0 0.0
        %620 = vmatprep.subr.mxu0 0.0
        %621 = vmatpush1.msra.mxu0 0.0
        %622 = vmatprep.subr.mxu0 0.0
        %623 = vmatpush1.msra.mxu0 0.0
        %624 = vmatprep.subr.mxu0 0.0
        %625 = vmatpush1.msra.mxu0 0.0
        %626 = vmatprep.subr.mxu0 0.0
        %627 = vmatpush1.msra.mxu0 0.0
        %628 = vmatprep.mubr.f32.mxu0 0.0
        %629 = vmatmul.mubr.f32.gmra.mrb[0].mxu0 %v550
        %v630 = vpop.f32.mrb[0].mxu0
        %v631 = vadd.f32 0.0, %v630
        %v632 = vpop.f32.mrb[0].mxu0
        %633 = vmatprep.mubr.f32.mxu0 0.0
        %634 = vmatmul.mubr.f32.gmra.mrb[0].mxu0 %v553
        %v635 = vpop.f32.mrb[0].mxu0
        %v636 = vadd.f32 0.0, %v635
        %v637 = vpop.f32.mrb[0].mxu0
        %638 = vmatprep.mubr.f32.mxu0 0.0
        %639 = vmatmul.mubr.f32.gmra.mrb[0].mxu0 %v556
        %v640 = vpop.f32.mrb[0].mxu0
        %v641 = vadd.f32 0.0, %v640
        %v642 = vpop.f32.mrb[0].mxu0
        %643 = vmatprep.mubr.f32.mxu0 0.0
        %644 = vmatmul.mubr.f32.gmra.mrb[0].mxu0 %v559
        %v645 = vpop.f32.mrb[0].mxu0
        %v646 = vadd.f32 0.0, %v645
        %v647 = vpop.f32.mrb[0].mxu0
        %648 = vmatprep.mubr.f32.mxu0 0.0
        %649 = vmatmul.mubr.f32.gmra.mrb[0].mxu0 %v562
        %v650 = vpop.f32.mrb[0].mxu0
        %v651 = vadd.f32 0.0, %v650
        %v652 = vpop.f32.mrb[0].mxu0
        %653 = vdwg.mxu0
        %v655 = vsel %vm481, %v534, 0
        %v658 = vsel %vm481, %v535, 0
        %v661 = vsel %vm481, %v536, 0
        %v664 = vsel %vm481, %v537, 0
        %v667 = vsel %vm481, %v538, 0
        %669 = vmatprep.subr.mxu0 0.0
        %670 = vmatpush1.msra.mxu0 %v539
        %671 = vmatprep.subr.mxu0 0.0
        %672 = vmatpush1.msra.mxu0 %v540
        %673 = vmatprep.subr.mxu0 0.0
        %674 = vmatpush1.msra.mxu0 0.0
        %675 = vmatprep.subr.mxu0 0.0
        %676 = vmatpush1.msra.mxu0 0.0
        %677 = vmatprep.subr.mxu0 0.0
        %678 = vmatpush1.msra.mxu0 0.0
        %679 = vmatprep.subr.mxu0 0.0
        %680 = vmatpush1.msra.mxu0 0.0
        %681 = vmatprep.subr.mxu0 0.0
        %682 = vmatpush1.msra.mxu0 0.0
        %683 = vmatprep.subr.mxu0 0.0
        %684 = vmatpush1.msra.mxu0 0.0
        %685 = vmatprep.subr.mxu0 0.0
        %686 = vmatpush1.msra.mxu0 0.0
        %687 = vmatprep.subr.mxu0 0.0
        %688 = vmatpush1.msra.mxu0 0.0
        %689 = vmatprep.subr.mxu0 0.0
        %690 = vmatpush1.msra.mxu0 0.0
        %691 = vmatprep.subr.mxu0 0.0
        %692 = vmatpush1.msra.mxu0 0.0
        %693 = vmatprep.subr.mxu0 0.0
        %694 = vmatpush1.msra.mxu0 0.0
        %695 = vmatprep.subr.mxu0 0.0
        %696 = vmatpush1.msra.mxu0 0.0
        %697 = vmatprep.subr.mxu0 0.0
        %698 = vmatpush1.msra.mxu0 0.0
        %699 = vmatprep.subr.mxu0 0.0
        %700 = vmatpush1.msra.mxu0 0.0
        %701 = vmatprep.subr.mxu0 0.0
        %702 = vmatpush1.msra.mxu0 0.0
        %703 = vmatprep.subr.mxu0 0.0
        %704 = vmatpush1.msra.mxu0 0.0
        %705 = vmatprep.subr.mxu0 0.0
        %706 = vmatpush1.msra.mxu0 0.0
        %707 = vmatprep.subr.mxu0 0.0
        %708 = vmatpush1.msra.mxu0 0.0
        %709 = vmatprep.subr.mxu0 0.0
        %710 = vmatpush1.msra.mxu0 0.0
        %711 = vmatprep.subr.mxu0 0.0
        %712 = vmatpush1.msra.mxu0 0.0
        %713 = vmatprep.subr.mxu0 0.0
        %714 = vmatpush1.msra.mxu0 0.0
        %715 = vmatprep.subr.mxu0 0.0
        %716 = vmatpush1.msra.mxu0 0.0
        %717 = vmatprep.subr.mxu0 0.0
        %718 = vmatpush1.msra.mxu0 0.0
        %719 = vmatprep.subr.mxu0 0.0
        %720 = vmatpush1.msra.mxu0 0.0
        %721 = vmatprep.subr.mxu0 0.0
        %722 = vmatpush1.msra.mxu0 0.0
        %723 = vmatprep.subr.mxu0 0.0
        %724 = vmatpush1.msra.mxu0 0.0
        %725 = vmatprep.subr.mxu0 0.0
        %726 = vmatpush1.msra.mxu0 0.0
        %727 = vmatprep.subr.mxu0 0.0
        %728 = vmatpush1.msra.mxu0 0.0
        %729 = vmatprep.subr.mxu0 0.0
        %730 = vmatpush1.msra.mxu0 0.0
        %731 = vmatprep.subr.mxu0 0.0
        %732 = vmatpush1.msra.mxu0 0.0
        %733 = vmatprep.mubr.f32.mxu0 0.0
        %734 = vmatmul.mubr.f32.gmra.mrb[0].mxu0 %v655
        %v735 = vpop.f32.mrb[0].mxu0
        %v736 = vadd.f32 %v631, %v735
        %v737 = vpop.f32.mrb[0].mxu0
        %738 = vmatprep.mubr.f32.mxu0 0.0
        %739 = vmatmul.mubr.f32.gmra.mrb[0].mxu0 %v658
        %v740 = vpop.f32.mrb[0].mxu0
        %v741 = vadd.f32 %v636, %v740
        %v742 = vpop.f32.mrb[0].mxu0
        %743 = vmatprep.mubr.f32.mxu0 0.0
        %744 = vmatmul.mubr.f32.gmra.mrb[0].mxu0 %v661
        %v745 = vpop.f32.mrb[0].mxu0
        %v746 = vadd.f32 %v641, %v745
        %v747 = vpop.f32.mrb[0].mxu0
        %748 = vmatprep.mubr.f32.mxu0 0.0
        %749 = vmatmul.mubr.f32.gmra.mrb[0].mxu0 %v664
        %v750 = vpop.f32.mrb[0].mxu0
        %v751 = vadd.f32 %v646, %v750
        %v752 = vpop.f32.mrb[0].mxu0
        %753 = vmatprep.mubr.f32.mxu0 0.0
        %754 = vmatmul.mubr.f32.gmra.mrb[0].mxu0 %v667
        %v755 = vpop.f32.mrb[0].mxu0
        %v756 = vadd.f32 %v651, %v755
        %v757 = vpop.f32.mrb[0].mxu0
        %758 = vdwg.mxu0
        %v759 = vld [vmem:[#allocation3 + $0x7] sm:$0xff]
        %v760 = vld [vmem:[#allocation3 + $0xf] sm:$0xff]
        %v761 = vld [vmem:[#allocation3 + $0x17] sm:$0xff]
        %v762 = vld [vmem:[#allocation3 + $0x1f] sm:$0xff]
        %v763 = vld [vmem:[#allocation3 + $0x27] sm:$0x1]
        %s764 = scalar_lea.vmem %s3, 32
        %v765 = vld [vmem:[%s764] sm:$0xff]
        %v766 = vld [vmem:[%s764 + $0x8] sm:$0xff]
        %v768 = vsel %vm481, %v759, 0
        %v771 = vsel %vm481, %v760, 0
        %v774 = vsel %vm481, %v761, 0
        %v777 = vsel %vm481, %v762, 0
        %v780 = vsel %vm481, %v763, 0
        %782 = vmatprep.subr.mxu0 0.0
        %783 = vmatpush1.msra.mxu0 %v765
        %784 = vmatprep.subr.mxu0 0.0
        %785 = vmatpush1.msra.mxu0 %v766
        %786 = vmatprep.subr.mxu0 0.0
        %787 = vmatpush1.msra.mxu0 0.0
        %788 = vmatprep.subr.mxu0 0.0
        %789 = vmatpush1.msra.mxu0 0.0
        %790 = vmatprep.subr.mxu0 0.0
        %791 = vmatpush1.msra.mxu0 0.0
        %792 = vmatprep.subr.mxu0 0.0
        %793 = vmatpush1.msra.mxu0 0.0
        %794 = vmatprep.subr.mxu0 0.0
        %795 = vmatpush1.msra.mxu0 0.0
        %796 = vmatprep.subr.mxu0 0.0
        %797 = vmatpush1.msra.mxu0 0.0
        %798 = vmatprep.subr.mxu0 0.0
        %799 = vmatpush1.msra.mxu0 0.0
        %800 = vmatprep.subr.mxu0 0.0
        %801 = vmatpush1.msra.mxu0 0.0
        %802 = vmatprep.subr.mxu0 0.0
        %803 = vmatpush1.msra.mxu0 0.0
        %804 = vmatprep.subr.mxu0 0.0
        %805 = vmatpush1.msra.mxu0 0.0
        %806 = vmatprep.subr.mxu0 0.0
        %807 = vmatpush1.msra.mxu0 0.0
        %808 = vmatprep.subr.mxu0 0.0
        %809 = vmatpush1.msra.mxu0 0.0
        %810 = vmatprep.subr.mxu0 0.0
        %811 = vmatpush1.msra.mxu0 0.0
        %812 = vmatprep.subr.mxu0 0.0
        %813 = vmatpush1.msra.mxu0 0.0
        %814 = vmatprep.subr.mxu0 0.0
        %815 = vmatpush1.msra.mxu0 0.0
        %816 = vmatprep.subr.mxu0 0.0
        %817 = vmatpush1.msra.mxu0 0.0
        %818 = vmatprep.subr.mxu0 0.0
        %819 = vmatpush1.msra.mxu0 0.0
        %820 = vmatprep.subr.mxu0 0.0
        %821 = vmatpush1.msra.mxu0 0.0
        %822 = vmatprep.subr.mxu0 0.0
        %823 = vmatpush1.msra.mxu0 0.0
        %824 = vmatprep.subr.mxu0 0.0
        %825 = vmatpush1.msra.mxu0 0.0
        %826 = vmatprep.subr.mxu0 0.0
        %827 = vmatpush1.msra.mxu0 0.0
        %828 = vmatprep.subr.mxu0 0.0
        %829 = vmatpush1.msra.mxu0 0.0
        %830 = vmatprep.subr.mxu0 0.0
        %831 = vmatpush1.msra.mxu0 0.0
        %832 = vmatprep.subr.mxu0 0.0
        %833 = vmatpush1.msra.mxu0 0.0
        %834 = vmatprep.subr.mxu0 0.0
        %835 = vmatpush1.msra.mxu0 0.0
        %836 = vmatprep.subr.mxu0 0.0
        %837 = vmatpush1.msra.mxu0 0.0
        %838 = vmatprep.subr.mxu0 0.0
        %839 = vmatpush1.msra.mxu0 0.0
        %840 = vmatprep.subr.mxu0 0.0
        %841 = vmatpush1.msra.mxu0 0.0
        %842 = vmatprep.subr.mxu0 0.0
        %843 = vmatpush1.msra.mxu0 0.0
        %844 = vmatprep.subr.mxu0 0.0
        %845 = vmatpush1.msra.mxu0 0.0
        %846 = vmatprep.mubr.f32.mxu0 0.0
        %847 = vmatmul.mubr.f32.gmra.mrb[0].mxu0 %v768
        %v848 = vpop.f32.mrb[0].mxu0
        %v849 = vadd.f32 0.0, %v848
        %v850 = vpop.f32.mrb[0].mxu0
        %851 = vmatprep.mubr.f32.mxu0 0.0
        %852 = vmatmul.mubr.f32.gmra.mrb[0].mxu0 %v771
        %v853 = vpop.f32.mrb[0].mxu0
        %v854 = vadd.f32 0.0, %v853
        %v855 = vpop.f32.mrb[0].mxu0
        %856 = vmatprep.mubr.f32.mxu0 0.0
        %857 = vmatmul.mubr.f32.gmra.mrb[0].mxu0 %v774
        %v858 = vpop.f32.mrb[0].mxu0
        %v859 = vadd.f32 0.0, %v858
        %v860 = vpop.f32.mrb[0].mxu0
        %861 = vmatprep.mubr.f32.mxu0 0.0
        %862 = vmatmul.mubr.f32.gmra.mrb[0].mxu0 %v777
        %v863 = vpop.f32.mrb[0].mxu0
        %v864 = vadd.f32 0.0, %v863
        %v865 = vpop.f32.mrb[0].mxu0
        %866 = vmatprep.mubr.f32.mxu0 0.0
        %867 = vmatmul.mubr.f32.gmra.mrb[0].mxu0 %v780
        %v868 = vpop.f32.mrb[0].mxu0
        %v869 = vadd.f32 0.0, %v868
        %v870 = vpop.f32.mrb[0].mxu0
        %871 = vdwg.mxu0
        %v872 = vadd.f32 %v736, %v849
        %v873 = vadd.f32 %v741, %v854
        %v874 = vadd.f32 %v746, %v859
        %v875 = vadd.f32 %v751, %v864
        %v876 = vadd.f32 %v756, %v869
        %v877 = vld [vmem:[#allocation3 + $0x8] sm:$0xff]
        %v878 = vld [vmem:[#allocation3 + $0x10] sm:$0xff]
        %v879 = vld [vmem:[#allocation3 + $0x18] sm:$0xff]
        %v880 = vld [vmem:[#allocation3 + $0x20] sm:$0xff]
        %v881 = vld [vmem:[#allocation3 + $0x28] sm:$0x1]
        %s882 = scalar_lea.vmem %s3, 48
        %v883 = vld [vmem:[%s882] sm:$0xff]
        %v884 = vld [vmem:[%s882 + $0x8] sm:$0xff]
        %v886 = vsel %vm481, %v877, 0
        %v889 = vsel %vm481, %v878, 0
        %v892 = vsel %vm481, %v879, 0
        %v895 = vsel %vm481, %v880, 0
        %v898 = vsel %vm481, %v881, 0
        %900 = vmatprep.subr.mxu0 0.0
        %901 = vmatpush1.msra.mxu0 %v883
        %902 = vmatprep.subr.mxu0 0.0
        %903 = vmatpush1.msra.mxu0 %v884
        %904 = vmatprep.subr.mxu0 0.0
        %905 = vmatpush1.msra.mxu0 0.0
        %906 = vmatprep.subr.mxu0 0.0
        %907 = vmatpush1.msra.mxu0 0.0
        %908 = vmatprep.subr.mxu0 0.0
        %909 = vmatpush1.msra.mxu0 0.0
        %910 = vmatprep.subr.mxu0 0.0
        %911 = vmatpush1.msra.mxu0 0.0
        %912 = vmatprep.subr.mxu0 0.0
        %913 = vmatpush1.msra.mxu0 0.0
        %914 = vmatprep.subr.mxu0 0.0
        %915 = vmatpush1.msra.mxu0 0.0
        %916 = vmatprep.subr.mxu0 0.0
        %917 = vmatpush1.msra.mxu0 0.0
        %918 = vmatprep.subr.mxu0 0.0
        %919 = vmatpush1.msra.mxu0 0.0
        %920 = vmatprep.subr.mxu0 0.0
        %921 = vmatpush1.msra.mxu0 0.0
        %922 = vmatprep.subr.mxu0 0.0
        %923 = vmatpush1.msra.mxu0 0.0
        %924 = vmatprep.subr.mxu0 0.0
        %925 = vmatpush1.msra.mxu0 0.0
        %926 = vmatprep.subr.mxu0 0.0
        %927 = vmatpush1.msra.mxu0 0.0
        %928 = vmatprep.subr.mxu0 0.0
        %929 = vmatpush1.msra.mxu0 0.0
        %930 = vmatprep.subr.mxu0 0.0
        %931 = vmatpush1.msra.mxu0 0.0
        %932 = vmatprep.subr.mxu0 0.0
        %933 = vmatpush1.msra.mxu0 0.0
        %934 = vmatprep.subr.mxu0 0.0
        %935 = vmatpush1.msra.mxu0 0.0
        %936 = vmatprep.subr.mxu0 0.0
        %937 = vmatpush1.msra.mxu0 0.0
        %938 = vmatprep.subr.mxu0 0.0
        %939 = vmatpush1.msra.mxu0 0.0
        %940 = vmatprep.subr.mxu0 0.0
        %941 = vmatpush1.msra.mxu0 0.0
        %942 = vmatprep.subr.mxu0 0.0
        %943 = vmatpush1.msra.mxu0 0.0
        %944 = vmatprep.subr.mxu0 0.0
        %945 = vmatpush1.msra.mxu0 0.0
        %946 = vmatprep.subr.mxu0 0.0
        %947 = vmatpush1.msra.mxu0 0.0
        %948 = vmatprep.subr.mxu0 0.0
        %949 = vmatpush1.msra.mxu0 0.0
        %950 = vmatprep.subr.mxu0 0.0
        %951 = vmatpush1.msra.mxu0 0.0
        %952 = vmatprep.subr.mxu0 0.0
        %953 = vmatpush1.msra.mxu0 0.0
        %954 = vmatprep.subr.mxu0 0.0
        %955 = vmatpush1.msra.mxu0 0.0
        %956 = vmatprep.subr.mxu0 0.0
        %957 = vmatpush1.msra.mxu0 0.0
        %958 = vmatprep.subr.mxu0 0.0
        %959 = vmatpush1.msra.mxu0 0.0
        %960 = vmatprep.subr.mxu0 0.0
        %961 = vmatpush1.msra.mxu0 0.0
        %962 = vmatprep.subr.mxu0 0.0
        %963 = vmatpush1.msra.mxu0 0.0
        %964 = vmatprep.mubr.f32.mxu0 0.0
        %965 = vmatmul.mubr.f32.gmra.mrb[0].mxu0 %v886
        %v966 = vpop.f32.mrb[0].mxu0
        %v967 = vadd.f32 0.0, %v966
        %v968 = vpop.f32.mrb[0].mxu0
        %969 = vmatprep.mubr.f32.mxu0 0.0
        %970 = vmatmul.mubr.f32.gmra.mrb[0].mxu0 %v889
        %v971 = vpop.f32.mrb[0].mxu0
        %v972 = vadd.f32 0.0, %v971
        %v973 = vpop.f32.mrb[0].mxu0
        %974 = vmatprep.mubr.f32.mxu0 0.0
        %975 = vmatmul.mubr.f32.gmra.mrb[0].mxu0 %v892
        %v976 = vpop.f32.mrb[0].mxu0
        %v977 = vadd.f32 0.0, %v976
        %v978 = vpop.f32.mrb[0].mxu0
        %979 = vmatprep.mubr.f32.mxu0 0.0
        %980 = vmatmul.mubr.f32.gmra.mrb[0].mxu0 %v895
        %v981 = vpop.f32.mrb[0].mxu0
        %v982 = vadd.f32 0.0, %v981
        %v983 = vpop.f32.mrb[0].mxu0
        %984 = vmatprep.mubr.f32.mxu0 0.0
        %985 = vmatmul.mubr.f32.gmra.mrb[0].mxu0 %v898
        %v986 = vpop.f32.mrb[0].mxu0
        %v987 = vadd.f32 0.0, %v986
        %v988 = vpop.f32.mrb[0].mxu0
        %989 = vdwg.mxu0
        %v990 = vadd.f32 %v872, %v967
        %v991 = vadd.f32 %v873, %v972
        %v992 = vadd.f32 %v874, %v977
        %v993 = vadd.f32 %v875, %v982
        %v994 = vadd.f32 %v876, %v987
        %v995 = vld [vmem:[%s4] sm:$0x1]
        %v997 = vlaneseq
        %v998 = vshrl.u32 %v997, 7
        %v999 = vsub.s32 0, %v998
        %v1000 = vrot.slane %v995, %v999
        %v1002 = vadd.f32 %v990, %v1000
        %v1003 = vadd.f32 %v991, %v1000
        %v1004 = vadd.f32 %v992, %v1000
        %v1005 = vadd.f32 %v993, %v1000
        %v1006 = vadd.f32 %v994, %v1000
        %v1007 = vmax.f32 %v1002, 0.0
        %v1008 = vmax.f32 %v1003, 0.0
        %v1009 = vmax.f32 %v1004, 0.0
        %v1010 = vmax.f32 %v1005, 0.0
        %v1011 = vmax.f32 %v1006, 0.0
        %vm1012 = vcmask 261120
        %1013 = vst.msk [vmem:[#allocation4] sm:$0xff] %vm1012, %v1007
        %1014 = vst.msk [vmem:[#allocation4 + $0x8] sm:$0xff] %vm1012, %v1008
        %1015 = vst.msk [vmem:[#allocation4 + $0x10] sm:$0xff] %vm1012, %v1009
        %1016 = vst.msk [vmem:[#allocation4 + $0x18] sm:$0xff] %vm1012, %v1010
        %vm1017 = vcmask 253952
        %1018 = vst.msk [vmem:[#allocation4 + $0x20] sm:$0x1] %vm1017, %v1011
        %v1019 = vld [vmem:[#allocation4] sm:$0xff]
        %v1020 = vld [vmem:[#allocation4 + $0x8] sm:$0xff]
        %v1021 = vld [vmem:[#allocation4 + $0x10] sm:$0xff]
        %v1022 = vld [vmem:[#allocation4 + $0x18] sm:$0x1]
        %v1023 = vld [vmem:[#allocation4 + $0x1] sm:$0xff]
        %v1024 = vld [vmem:[#allocation4 + $0x9] sm:$0xff]
        %v1025 = vld [vmem:[#allocation4 + $0x11] sm:$0xff]
        %v1026 = vld [vmem:[#allocation4 + $0x19] sm:$0x1]
        %v1027 = vmax.f32 %v1019, %v1023
        %v1028 = vmax.f32 %v1020, %v1024
        %v1029 = vmax.f32 %v1021, %v1025
        %v1030 = vmax.f32 %v1022, %v1026
        %v1031 = vld [vmem:[#allocation4 + $0x7] sm:$0xff]
        %v1032 = vld [vmem:[#allocation4 + $0xf] sm:$0xff]
        %v1033 = vld [vmem:[#allocation4 + $0x17] sm:$0xff]
        %v1034 = vld [vmem:[#allocation4 + $0x1f] sm:$0x1]
        %v1035 = vld [vmem:[#allocation4 + $0x18] sm:$0xff]
        %v1036 = vld [vmem:[#allocation4 + $0x20] sm:$0x1]
        %v1037 = vmax.f32 %v1031, %v1020
        %v1038 = vmax.f32 %v1032, %v1021
        %v1039 = vmax.f32 %v1033, %v1035
        %v1040 = vmax.f32 %v1034, %v1036
        %v1041 = vmax.f32 %v1027, %v1037
        %v1042 = vmax.f32 %v1028, %v1038
        %v1043 = vmax.f32 %v1029, %v1039
        %v1044 = vmax.f32 %v1030, %v1040
        %1045 = vst.msk [vmem:[#allocation5] sm:$0xff] %vm1012, %v1041
        %1046 = vst.msk [vmem:[#allocation5 + $0x8] sm:$0xff] %vm1012, %v1042
        %1047 = vst.msk [vmem:[#allocation5 + $0x10] sm:$0xff] %vm1012, %v1043
        %1048 = vst.msk [vmem:[#allocation5 + $0x18] sm:$0x1] %vm1017, %v1044
        %v1049 = vld [vmem:[%s6] sm:$0x1]
        %v1050 = vld [vmem:[#allocation5] sm:$0x1]
        %v1051 = vld [vmem:[%s5] sm:$0xff]
        %v1052 = vld [vmem:[%s5 + $0x8] sm:$0xff]
        %v1053 = vld [vmem:[%s5 + $0x10] sm:$0xff]
        %v1054 = vld [vmem:[%s5 + $0x18] sm:$0xff]
        %v1056 = vsel %vm1012, %v1050, 0
        %1058 = vmatprep.subr.mxu0 0.0
        %1059 = vmatpush1.msra.mxu0 %v1051
        %1060 = vmatprep.subr.mxu0 0.0
        %1061 = vmatpush1.msra.mxu0 %v1052
        %1062 = vmatprep.subr.mxu0 0.0
        %1063 = vmatpush1.msra.mxu0 %v1053
        %1064 = vmatprep.subr.mxu0 0.0
        %1065 = vmatpush1.msra.mxu0 %v1054
        %1066 = vmatprep.subr.mxu0 0.0
        %1067 = vmatpush1.msra.mxu0 0.0
        %1068 = vmatprep.subr.mxu0 0.0
        %1069 = vmatpush1.msra.mxu0 0.0
        %1070 = vmatprep.subr.mxu0 0.0
        %1071 = vmatpush1.msra.mxu0 0.0
        %1072 = vmatprep.subr.mxu0 0.0
        %1073 = vmatpush1.msra.mxu0 0.0
        %1074 = vmatprep.subr.mxu0 0.0
        %1075 = vmatpush1.msra.mxu0 0.0
        %1076 = vmatprep.subr.mxu0 0.0
        %1077 = vmatpush1.msra.mxu0 0.0
        %1078 = vmatprep.subr.mxu0 0.0
        %1079 = vmatpush1.msra.mxu0 0.0
        %1080 = vmatprep.subr.mxu0 0.0
        %1081 = vmatpush1.msra.mxu0 0.0
        %1082 = vmatprep.subr.mxu0 0.0
        %1083 = vmatpush1.msra.mxu0 0.0
        %1084 = vmatprep.subr.mxu0 0.0
        %1085 = vmatpush1.msra.mxu0 0.0
        %1086 = vmatprep.subr.mxu0 0.0
        %1087 = vmatpush1.msra.mxu0 0.0
        %1088 = vmatprep.subr.mxu0 0.0
        %1089 = vmatpush1.msra.mxu0 0.0
        %1090 = vmatprep.subr.mxu0 0.0
        %1091 = vmatpush1.msra.mxu0 0.0
        %1092 = vmatprep.subr.mxu0 0.0
        %1093 = vmatpush1.msra.mxu0 0.0
        %1094 = vmatprep.subr.mxu0 0.0
        %1095 = vmatpush1.msra.mxu0 0.0
        %1096 = vmatprep.subr.mxu0 0.0
        %1097 = vmatpush1.msra.mxu0 0.0
        %1098 = vmatprep.subr.mxu0 0.0
        %1099 = vmatpush1.msra.mxu0 0.0
        %1100 = vmatprep.subr.mxu0 0.0
        %1101 = vmatpush1.msra.mxu0 0.0
        %1102 = vmatprep.subr.mxu0 0.0
        %1103 = vmatpush1.msra.mxu0 0.0
        %1104 = vmatprep.subr.mxu0 0.0
        %1105 = vmatpush1.msra.mxu0 0.0
        %1106 = vmatprep.subr.mxu0 0.0
        %1107 = vmatpush1.msra.mxu0 0.0
        %1108 = vmatprep.subr.mxu0 0.0
        %1109 = vmatpush1.msra.mxu0 0.0
        %1110 = vmatprep.subr.mxu0 0.0
        %1111 = vmatpush1.msra.mxu0 0.0
        %1112 = vmatprep.subr.mxu0 0.0
        %1113 = vmatpush1.msra.mxu0 0.0
        %1114 = vmatprep.subr.mxu0 0.0
        %1115 = vmatpush1.msra.mxu0 0.0
        %1116 = vmatprep.subr.mxu0 0.0
        %1117 = vmatpush1.msra.mxu0 0.0
        %1118 = vmatprep.subr.mxu0 0.0
        %1119 = vmatpush1.msra.mxu0 0.0
        %1120 = vmatprep.subr.mxu0 0.0
        %1121 = vmatpush1.msra.mxu0 0.0
        %1122 = vmatprep.mubr.f32.mxu0 0.0
        %1123 = vmatmul.mubr.f32.gmra.mrb[0].mxu0 %v1056
        %v1124 = vpop.f32.mrb[0].mxu0
        %v1125 = vadd.f32 0.0, %v1124
        %v1126 = vpop.f32.mrb[0].mxu0
        %1127 = vdwg.mxu0
        %v1128 = vadd.f32 %v1049, %v1125
        %v1129 = vld [vmem:[#allocation5 + $0x1] sm:$0x1]
        %s1130 = scalar_lea.vmem %s5, 32
        %v1131 = vld [vmem:[%s1130] sm:$0xff]
        %v1132 = vld [vmem:[%s1130 + $0x8] sm:$0xff]
        %v1133 = vld [vmem:[%s1130 + $0x10] sm:$0xff]
        %v1134 = vld [vmem:[%s1130 + $0x18] sm:$0xff]
        %v1136 = vsel %vm1012, %v1129, 0
        %1138 = vmatprep.subr.mxu0 0.0
        %1139 = vmatpush1.msra.mxu0 %v1131
        %1140 = vmatprep.subr.mxu0 0.0
        %1141 = vmatpush1.msra.mxu0 %v1132
        %1142 = vmatprep.subr.mxu0 0.0
        %1143 = vmatpush1.msra.mxu0 %v1133
        %1144 = vmatprep.subr.mxu0 0.0
        %1145 = vmatpush1.msra.mxu0 %v1134
        %1146 = vmatprep.subr.mxu0 0.0
        %1147 = vmatpush1.msra.mxu0 0.0
        %1148 = vmatprep.subr.mxu0 0.0
        %1149 = vmatpush1.msra.mxu0 0.0
        %1150 = vmatprep.subr.mxu0 0.0
        %1151 = vmatpush1.msra.mxu0 0.0
        %1152 = vmatprep.subr.mxu0 0.0
        %1153 = vmatpush1.msra.mxu0 0.0
        %1154 = vmatprep.subr.mxu0 0.0
        %1155 = vmatpush1.msra.mxu0 0.0
        %1156 = vmatprep.subr.mxu0 0.0
        %1157 = vmatpush1.msra.mxu0 0.0
        %1158 = vmatprep.subr.mxu0 0.0
        %1159 = vmatpush1.msra.mxu0 0.0
        %1160 = vmatprep.subr.mxu0 0.0
        %1161 = vmatpush1.msra.mxu0 0.0
        %1162 = vmatprep.subr.mxu0 0.0
        %1163 = vmatpush1.msra.mxu0 0.0
        %1164 = vmatprep.subr.mxu0 0.0
        %1165 = vmatpush1.msra.mxu0 0.0
        %1166 = vmatprep.subr.mxu0 0.0
        %1167 = vmatpush1.msra.mxu0 0.0
        %1168 = vmatprep.subr.mxu0 0.0
        %1169 = vmatpush1.msra.mxu0 0.0
        %1170 = vmatprep.subr.mxu0 0.0
        %1171 = vmatpush1.msra.mxu0 0.0
        %1172 = vmatprep.subr.mxu0 0.0
        %1173 = vmatpush1.msra.mxu0 0.0
        %1174 = vmatprep.subr.mxu0 0.0
        %1175 = vmatpush1.msra.mxu0 0.0
        %1176 = vmatprep.subr.mxu0 0.0
        %1177 = vmatpush1.msra.mxu0 0.0
        %1178 = vmatprep.subr.mxu0 0.0
        %1179 = vmatpush1.msra.mxu0 0.0
        %1180 = vmatprep.subr.mxu0 0.0
        %1181 = vmatpush1.msra.mxu0 0.0
        %1182 = vmatprep.subr.mxu0 0.0
        %1183 = vmatpush1.msra.mxu0 0.0
        %1184 = vmatprep.subr.mxu0 0.0
        %1185 = vmatpush1.msra.mxu0 0.0
        %1186 = vmatprep.subr.mxu0 0.0
        %1187 = vmatpush1.msra.mxu0 0.0
        %1188 = vmatprep.subr.mxu0 0.0
        %1189 = vmatpush1.msra.mxu0 0.0
        %1190 = vmatprep.subr.mxu0 0.0
        %1191 = vmatpush1.msra.mxu0 0.0
        %1192 = vmatprep.subr.mxu0 0.0
        %1193 = vmatpush1.msra.mxu0 0.0
        %1194 = vmatprep.subr.mxu0 0.0
        %1195 = vmatpush1.msra.mxu0 0.0
        %1196 = vmatprep.subr.mxu0 0.0
        %1197 = vmatpush1.msra.mxu0 0.0
        %1198 = vmatprep.subr.mxu0 0.0
        %1199 = vmatpush1.msra.mxu0 0.0
        %1200 = vmatprep.subr.mxu0 0.0
        %1201 = vmatpush1.msra.mxu0 0.0
        %1202 = vmatprep.mubr.f32.mxu0 0.0
        %1203 = vmatmul.mubr.f32.gmra.mrb[0].mxu0 %v1136
        %v1204 = vpop.f32.mrb[0].mxu0
        %v1205 = vadd.f32 0.0, %v1204
        %v1206 = vpop.f32.mrb[0].mxu0
        %1207 = vdwg.mxu0
        %v1208 = vadd.f32 %v1128, %v1205
        %v1209 = vld [vmem:[#allocation5 + $0x2] sm:$0x1]
        %s1210 = scalar_lea.vmem %s5, 64
        %v1211 = vld [vmem:[%s1210] sm:$0xff]
        %v1212 = vld [vmem:[%s1210 + $0x8] sm:$0xff]
        %v1213 = vld [vmem:[%s1210 + $0x10] sm:$0xff]
        %v1214 = vld [vmem:[%s1210 + $0x18] sm:$0xff]
        %v1216 = vsel %vm1012, %v1209, 0
        %1218 = vmatprep.subr.mxu0 0.0
        %1219 = vmatpush1.msra.mxu0 %v1211
        %1220 = vmatprep.subr.mxu0 0.0
        %1221 = vmatpush1.msra.mxu0 %v1212
        %1222 = vmatprep.subr.mxu0 0.0
        %1223 = vmatpush1.msra.mxu0 %v1213
        %1224 = vmatprep.subr.mxu0 0.0
        %1225 = vmatpush1.msra.mxu0 %v1214
        %1226 = vmatprep.subr.mxu0 0.0
        %1227 = vmatpush1.msra.mxu0 0.0
        %1228 = vmatprep.subr.mxu0 0.0
        %1229 = vmatpush1.msra.mxu0 0.0
        %1230 = vmatprep.subr.mxu0 0.0
        %1231 = vmatpush1.msra.mxu0 0.0
        %1232 = vmatprep.subr.mxu0 0.0
        %1233 = vmatpush1.msra.mxu0 0.0
        %1234 = vmatprep.subr.mxu0 0.0
        %1235 = vmatpush1.msra.mxu0 0.0
        %1236 = vmatprep.subr.mxu0 0.0
        %1237 = vmatpush1.msra.mxu0 0.0
        %1238 = vmatprep.subr.mxu0 0.0
        %1239 = vmatpush1.msra.mxu0 0.0
        %1240 = vmatprep.subr.mxu0 0.0
        %1241 = vmatpush1.msra.mxu0 0.0
        %1242 = vmatprep.subr.mxu0 0.0
        %1243 = vmatpush1.msra.mxu0 0.0
        %1244 = vmatprep.subr.mxu0 0.0
        %1245 = vmatpush1.msra.mxu0 0.0
        %1246 = vmatprep.subr.mxu0 0.0
        %1247 = vmatpush1.msra.mxu0 0.0
        %1248 = vmatprep.subr.mxu0 0.0
        %1249 = vmatpush1.msra.mxu0 0.0
        %1250 = vmatprep.subr.mxu0 0.0
        %1251 = vmatpush1.msra.mxu0 0.0
        %1252 = vmatprep.subr.mxu0 0.0
        %1253 = vmatpush1.msra.mxu0 0.0
        %1254 = vmatprep.subr.mxu0 0.0
        %1255 = vmatpush1.msra.mxu0 0.0
        %1256 = vmatprep.subr.mxu0 0.0
        %1257 = vmatpush1.msra.mxu0 0.0
        %1258 = vmatprep.subr.mxu0 0.0
        %1259 = vmatpush1.msra.mxu0 0.0
        %1260 = vmatprep.subr.mxu0 0.0
        %1261 = vmatpush1.msra.mxu0 0.0
        %1262 = vmatprep.subr.mxu0 0.0
        %1263 = vmatpush1.msra.mxu0 0.0
        %1264 = vmatprep.subr.mxu0 0.0
        %1265 = vmatpush1.msra.mxu0 0.0
        %1266 = vmatprep.subr.mxu0 0.0
        %1267 = vmatpush1.msra.mxu0 0.0
        %1268 = vmatprep.subr.mxu0 0.0
        %1269 = vmatpush1.msra.mxu0 0.0
        %1270 = vmatprep.subr.mxu0 0.0
        %1271 = vmatpush1.msra.mxu0 0.0
        %1272 = vmatprep.subr.mxu0 0.0
        %1273 = vmatpush1.msra.mxu0 0.0
        %1274 = vmatprep.subr.mxu0 0.0
        %1275 = vmatpush1.msra.mxu0 0.0
        %1276 = vmatprep.subr.mxu0 0.0
        %1277 = vmatpush1.msra.mxu0 0.0
        %1278 = vmatprep.subr.mxu0 0.0
        %1279 = vmatpush1.msra.mxu0 0.0
        %1280 = vmatprep.subr.mxu0 0.0
        %1281 = vmatpush1.msra.mxu0 0.0
        %1282 = vmatprep.mubr.f32.mxu0 0.0
        %1283 = vmatmul.mubr.f32.gmra.mrb[0].mxu0 %v1216
        %v1284 = vpop.f32.mrb[0].mxu0
        %v1285 = vadd.f32 0.0, %v1284
        %v1286 = vpop.f32.mrb[0].mxu0
        %1287 = vdwg.mxu0
        %v1288 = vadd.f32 %v1208, %v1285
        %v1289 = vld [vmem:[#allocation5 + $0x3] sm:$0x1]
        %s1290 = scalar_lea.vmem %s5, 96
        %v1291 = vld [vmem:[%s1290] sm:$0xff]
        %v1292 = vld [vmem:[%s1290 + $0x8] sm:$0xff]
        %v1293 = vld [vmem:[%s1290 + $0x10] sm:$0xff]
        %v1294 = vld [vmem:[%s1290 + $0x18] sm:$0xff]
        %v1296 = vsel %vm1012, %v1289, 0
        %1298 = vmatprep.subr.mxu0 0.0
        %1299 = vmatpush1.msra.mxu0 %v1291
        %1300 = vmatprep.subr.mxu0 0.0
        %1301 = vmatpush1.msra.mxu0 %v1292
        %1302 = vmatprep.subr.mxu0 0.0
        %1303 = vmatpush1.msra.mxu0 %v1293
        %1304 = vmatprep.subr.mxu0 0.0
        %1305 = vmatpush1.msra.mxu0 %v1294
        %1306 = vmatprep.subr.mxu0 0.0
        %1307 = vmatpush1.msra.mxu0 0.0
        %1308 = vmatprep.subr.mxu0 0.0
        %1309 = vmatpush1.msra.mxu0 0.0
        %1310 = vmatprep.subr.mxu0 0.0
        %1311 = vmatpush1.msra.mxu0 0.0
        %1312 = vmatprep.subr.mxu0 0.0
        %1313 = vmatpush1.msra.mxu0 0.0
        %1314 = vmatprep.subr.mxu0 0.0
        %1315 = vmatpush1.msra.mxu0 0.0
        %1316 = vmatprep.subr.mxu0 0.0
        %1317 = vmatpush1.msra.mxu0 0.0
        %1318 = vmatprep.subr.mxu0 0.0
        %1319 = vmatpush1.msra.mxu0 0.0
        %1320 = vmatprep.subr.mxu0 0.0
        %1321 = vmatpush1.msra.mxu0 0.0
        %1322 = vmatprep.subr.mxu0 0.0
        %1323 = vmatpush1.msra.mxu0 0.0
        %1324 = vmatprep.subr.mxu0 0.0
        %1325 = vmatpush1.msra.mxu0 0.0
        %1326 = vmatprep.subr.mxu0 0.0
        %1327 = vmatpush1.msra.mxu0 0.0
        %1328 = vmatprep.subr.mxu0 0.0
        %1329 = vmatpush1.msra.mxu0 0.0
        %1330 = vmatprep.subr.mxu0 0.0
        %1331 = vmatpush1.msra.mxu0 0.0
        %1332 = vmatprep.subr.mxu0 0.0
        %1333 = vmatpush1.msra.mxu0 0.0
        %1334 = vmatprep.subr.mxu0 0.0
        %1335 = vmatpush1.msra.mxu0 0.0
        %1336 = vmatprep.subr.mxu0 0.0
        %1337 = vmatpush1.msra.mxu0 0.0
        %1338 = vmatprep.subr.mxu0 0.0
        %1339 = vmatpush1.msra.mxu0 0.0
        %1340 = vmatprep.subr.mxu0 0.0
        %1341 = vmatpush1.msra.mxu0 0.0
        %1342 = vmatprep.subr.mxu0 0.0
        %1343 = vmatpush1.msra.mxu0 0.0
        %1344 = vmatprep.subr.mxu0 0.0
        %1345 = vmatpush1.msra.mxu0 0.0
        %1346 = vmatprep.subr.mxu0 0.0
        %1347 = vmatpush1.msra.mxu0 0.0
        %1348 = vmatprep.subr.mxu0 0.0
        %1349 = vmatpush1.msra.mxu0 0.0
        %1350 = vmatprep.subr.mxu0 0.0
        %1351 = vmatpush1.msra.mxu0 0.0
        %1352 = vmatprep.subr.mxu0 0.0
        %1353 = vmatpush1.msra.mxu0 0.0
        %1354 = vmatprep.subr.mxu0 0.0
        %1355 = vmatpush1.msra.mxu0 0.0
        %1356 = vmatprep.subr.mxu0 0.0
        %1357 = vmatpush1.msra.mxu0 0.0
        %1358 = vmatprep.subr.mxu0 0.0
        %1359 = vmatpush1.msra.mxu0 0.0
        %1360 = vmatprep.subr.mxu0 0.0
        %1361 = vmatpush1.msra.mxu0 0.0
        %1362 = vmatprep.mubr.f32.mxu0 0.0
        %1363 = vmatmul.mubr.f32.gmra.mrb[0].mxu0 %v1296
        %v1364 = vpop.f32.mrb[0].mxu0
        %v1365 = vadd.f32 0.0, %v1364
        %v1366 = vpop.f32.mrb[0].mxu0
        %1367 = vdwg.mxu0
        %v1368 = vadd.f32 %v1288, %v1365
        %v1369 = vld [vmem:[#allocation5 + $0x7] sm:$0x1]
        %s1370 = scalar_lea.vmem %s5, 128
        %v1371 = vld [vmem:[%s1370] sm:$0xff]
        %v1372 = vld [vmem:[%s1370 + $0x8] sm:$0xff]
        %v1373 = vld [vmem:[%s1370 + $0x10] sm:$0xff]
        %v1374 = vld [vmem:[%s1370 + $0x18] sm:$0xff]
        %v1376 = vsel %vm1012, %v1369, 0
        %1378 = vmatprep.subr.mxu0 0.0
        %1379 = vmatpush1.msra.mxu0 %v1371
        %1380 = vmatprep.subr.mxu0 0.0
        %1381 = vmatpush1.msra.mxu0 %v1372
        %1382 = vmatprep.subr.mxu0 0.0
        %1383 = vmatpush1.msra.mxu0 %v1373
        %1384 = vmatprep.subr.mxu0 0.0
        %1385 = vmatpush1.msra.mxu0 %v1374
        %1386 = vmatprep.subr.mxu0 0.0
        %1387 = vmatpush1.msra.mxu0 0.0
        %1388 = vmatprep.subr.mxu0 0.0
        %1389 = vmatpush1.msra.mxu0 0.0
        %1390 = vmatprep.subr.mxu0 0.0
        %1391 = vmatpush1.msra.mxu0 0.0
        %1392 = vmatprep.subr.mxu0 0.0
        %1393 = vmatpush1.msra.mxu0 0.0
        %1394 = vmatprep.subr.mxu0 0.0
        %1395 = vmatpush1.msra.mxu0 0.0
        %1396 = vmatprep.subr.mxu0 0.0
        %1397 = vmatpush1.msra.mxu0 0.0
        %1398 = vmatprep.subr.mxu0 0.0
        %1399 = vmatpush1.msra.mxu0 0.0
        %1400 = vmatprep.subr.mxu0 0.0
        %1401 = vmatpush1.msra.mxu0 0.0
        %1402 = vmatprep.subr.mxu0 0.0
        %1403 = vmatpush1.msra.mxu0 0.0
        %1404 = vmatprep.subr.mxu0 0.0
        %1405 = vmatpush1.msra.mxu0 0.0
        %1406 = vmatprep.subr.mxu0 0.0
        %1407 = vmatpush1.msra.mxu0 0.0
        %1408 = vmatprep.subr.mxu0 0.0
        %1409 = vmatpush1.msra.mxu0 0.0
        %1410 = vmatprep.subr.mxu0 0.0
        %1411 = vmatpush1.msra.mxu0 0.0
        %1412 = vmatprep.subr.mxu0 0.0
        %1413 = vmatpush1.msra.mxu0 0.0
        %1414 = vmatprep.subr.mxu0 0.0
        %1415 = vmatpush1.msra.mxu0 0.0
        %1416 = vmatprep.subr.mxu0 0.0
        %1417 = vmatpush1.msra.mxu0 0.0
        %1418 = vmatprep.subr.mxu0 0.0
        %1419 = vmatpush1.msra.mxu0 0.0
        %1420 = vmatprep.subr.mxu0 0.0
        %1421 = vmatpush1.msra.mxu0 0.0
        %1422 = vmatprep.subr.mxu0 0.0
        %1423 = vmatpush1.msra.mxu0 0.0
        %1424 = vmatprep.subr.mxu0 0.0
        %1425 = vmatpush1.msra.mxu0 0.0
        %1426 = vmatprep.subr.mxu0 0.0
        %1427 = vmatpush1.msra.mxu0 0.0
        %1428 = vmatprep.subr.mxu0 0.0
        %1429 = vmatpush1.msra.mxu0 0.0
        %1430 = vmatprep.subr.mxu0 0.0
        %1431 = vmatpush1.msra.mxu0 0.0
        %1432 = vmatprep.subr.mxu0 0.0
        %1433 = vmatpush1.msra.mxu0 0.0
        %1434 = vmatprep.subr.mxu0 0.0
        %1435 = vmatpush1.msra.mxu0 0.0
        %1436 = vmatprep.subr.mxu0 0.0
        %1437 = vmatpush1.msra.mxu0 0.0
        %1438 = vmatprep.subr.mxu0 0.0
        %1439 = vmatpush1.msra.mxu0 0.0
        %1440 = vmatprep.subr.mxu0 0.0
        %1441 = vmatpush1.msra.mxu0 0.0
        %1442 = vmatprep.mubr.f32.mxu0 0.0
        %1443 = vmatmul.mubr.f32.gmra.mrb[0].mxu0 %v1376
        %v1444 = vpop.f32.mrb[0].mxu0
        %v1445 = vadd.f32 0.0, %v1444
        %v1446 = vpop.f32.mrb[0].mxu0
        %1447 = vdwg.mxu0
        %v1448 = vadd.f32 %v1368, %v1445
        %v1449 = vld [vmem:[#allocation5 + $0x8] sm:$0x1]
        %s1450 = scalar_lea.vmem %s5, 160
        %v1451 = vld [vmem:[%s1450] sm:$0xff]
        %v1452 = vld [vmem:[%s1450 + $0x8] sm:$0xff]
        %v1453 = vld [vmem:[%s1450 + $0x10] sm:$0xff]
        %v1454 = vld [vmem:[%s1450 + $0x18] sm:$0xff]
        %v1456 = vsel %vm1012, %v1449, 0
        %1458 = vmatprep.subr.mxu0 0.0
        %1459 = vmatpush1.msra.mxu0 %v1451
        %1460 = vmatprep.subr.mxu0 0.0
        %1461 = vmatpush1.msra.mxu0 %v1452
        %1462 = vmatprep.subr.mxu0 0.0
        %1463 = vmatpush1.msra.mxu0 %v1453
        %1464 = vmatprep.subr.mxu0 0.0
        %1465 = vmatpush1.msra.mxu0 %v1454
        %1466 = vmatprep.subr.mxu0 0.0
        %1467 = vmatpush1.msra.mxu0 0.0
        %1468 = vmatprep.subr.mxu0 0.0
        %1469 = vmatpush1.msra.mxu0 0.0
        %1470 = vmatprep.subr.mxu0 0.0
        %1471 = vmatpush1.msra.mxu0 0.0
        %1472 = vmatprep.subr.mxu0 0.0
        %1473 = vmatpush1.msra.mxu0 0.0
        %1474 = vmatprep.subr.mxu0 0.0
        %1475 = vmatpush1.msra.mxu0 0.0
        %1476 = vmatprep.subr.mxu0 0.0
        %1477 = vmatpush1.msra.mxu0 0.0
        %1478 = vmatprep.subr.mxu0 0.0
        %1479 = vmatpush1.msra.mxu0 0.0
        %1480 = vmatprep.subr.mxu0 0.0
        %1481 = vmatpush1.msra.mxu0 0.0
        %1482 = vmatprep.subr.mxu0 0.0
        %1483 = vmatpush1.msra.mxu0 0.0
        %1484 = vmatprep.subr.mxu0 0.0
        %1485 = vmatpush1.msra.mxu0 0.0
        %1486 = vmatprep.subr.mxu0 0.0
        %1487 = vmatpush1.msra.mxu0 0.0
        %1488 = vmatprep.subr.mxu0 0.0
        %1489 = vmatpush1.msra.mxu0 0.0
        %1490 = vmatprep.subr.mxu0 0.0
        %1491 = vmatpush1.msra.mxu0 0.0
        %1492 = vmatprep.subr.mxu0 0.0
        %1493 = vmatpush1.msra.mxu0 0.0
        %1494 = vmatprep.subr.mxu0 0.0
        %1495 = vmatpush1.msra.mxu0 0.0
        %1496 = vmatprep.subr.mxu0 0.0
        %1497 = vmatpush1.msra.mxu0 0.0
        %1498 = vmatprep.subr.mxu0 0.0
        %1499 = vmatpush1.msra.mxu0 0.0
        %1500 = vmatprep.subr.mxu0 0.0
        %1501 = vmatpush1.msra.mxu0 0.0
        %1502 = vmatprep.subr.mxu0 0.0
        %1503 = vmatpush1.msra.mxu0 0.0
        %1504 = vmatprep.subr.mxu0 0.0
        %1505 = vmatpush1.msra.mxu0 0.0
        %1506 = vmatprep.subr.mxu0 0.0
        %1507 = vmatpush1.msra.mxu0 0.0
        %1508 = vmatprep.subr.mxu0 0.0
        %1509 = vmatpush1.msra.mxu0 0.0
        %1510 = vmatprep.subr.mxu0 0.0
        %1511 = vmatpush1.msra.mxu0 0.0
        %1512 = vmatprep.subr.mxu0 0.0
        %1513 = vmatpush1.msra.mxu0 0.0
        %1514 = vmatprep.subr.mxu0 0.0
        %1515 = vmatpush1.msra.mxu0 0.0
        %1516 = vmatprep.subr.mxu0 0.0
        %1517 = vmatpush1.msra.mxu0 0.0
        %1518 = vmatprep.subr.mxu0 0.0
        %1519 = vmatpush1.msra.mxu0 0.0
        %1520 = vmatprep.subr.mxu0 0.0
        %1521 = vmatpush1.msra.mxu0 0.0
        %1522 = vmatprep.mubr.f32.mxu0 0.0
        %1523 = vmatmul.mubr.f32.gmra.mrb[0].mxu0 %v1456
        %v1524 = vpop.f32.mrb[0].mxu0
        %v1525 = vadd.f32 0.0, %v1524
        %v1526 = vpop.f32.mrb[0].mxu0
        %1527 = vdwg.mxu0
        %v1528 = vadd.f32 %v1448, %v1525
        %v1529 = vld [vmem:[#allocation5 + $0x9] sm:$0x1]
        %s1530 = scalar_lea.vmem %s5, 192
        %v1531 = vld [vmem:[%s1530] sm:$0xff]
        %v1532 = vld [vmem:[%s1530 + $0x8] sm:$0xff]
        %v1533 = vld [vmem:[%s1530 + $0x10] sm:$0xff]
        %v1534 = vld [vmem:[%s1530 + $0x18] sm:$0xff]
        %v1536 = vsel %vm1012, %v1529, 0
        %1538 = vmatprep.subr.mxu0 0.0
        %1539 = vmatpush1.msra.mxu0 %v1531
        %1540 = vmatprep.subr.mxu0 0.0
        %1541 = vmatpush1.msra.mxu0 %v1532
        %1542 = vmatprep.subr.mxu0 0.0
        %1543 = vmatpush1.msra.mxu0 %v1533
        %1544 = vmatprep.subr.mxu0 0.0
        %1545 = vmatpush1.msra.mxu0 %v1534
        %1546 = vmatprep.subr.mxu0 0.0
        %1547 = vmatpush1.msra.mxu0 0.0
        %1548 = vmatprep.subr.mxu0 0.0
        %1549 = vmatpush1.msra.mxu0 0.0
        %1550 = vmatprep.subr.mxu0 0.0
        %1551 = vmatpush1.msra.mxu0 0.0
        %1552 = vmatprep.subr.mxu0 0.0
        %1553 = vmatpush1.msra.mxu0 0.0
        %1554 = vmatprep.subr.mxu0 0.0
        %1555 = vmatpush1.msra.mxu0 0.0
        %1556 = vmatprep.subr.mxu0 0.0
        %1557 = vmatpush1.msra.mxu0 0.0
        %1558 = vmatprep.subr.mxu0 0.0
        %1559 = vmatpush1.msra.mxu0 0.0
        %1560 = vmatprep.subr.mxu0 0.0
        %1561 = vmatpush1.msra.mxu0 0.0
        %1562 = vmatprep.subr.mxu0 0.0
        %1563 = vmatpush1.msra.mxu0 0.0
        %1564 = vmatprep.subr.mxu0 0.0
        %1565 = vmatpush1.msra.mxu0 0.0
        %1566 = vmatprep.subr.mxu0 0.0
        %1567 = vmatpush1.msra.mxu0 0.0
        %1568 = vmatprep.subr.mxu0 0.0
        %1569 = vmatpush1.msra.mxu0 0.0
        %1570 = vmatprep.subr.mxu0 0.0
        %1571 = vmatpush1.msra.mxu0 0.0
        %1572 = vmatprep.subr.mxu0 0.0
        %1573 = vmatpush1.msra.mxu0 0.0
        %1574 = vmatprep.subr.mxu0 0.0
        %1575 = vmatpush1.msra.mxu0 0.0
        %1576 = vmatprep.subr.mxu0 0.0
        %1577 = vmatpush1.msra.mxu0 0.0
        %1578 = vmatprep.subr.mxu0 0.0
        %1579 = vmatpush1.msra.mxu0 0.0
        %1580 = vmatprep.subr.mxu0 0.0
        %1581 = vmatpush1.msra.mxu0 0.0
        %1582 = vmatprep.subr.mxu0 0.0
        %1583 = vmatpush1.msra.mxu0 0.0
        %1584 = vmatprep.subr.mxu0 0.0
        %1585 = vmatpush1.msra.mxu0 0.0
        %1586 = vmatprep.subr.mxu0 0.0
        %1587 = vmatpush1.msra.mxu0 0.0
        %1588 = vmatprep.subr.mxu0 0.0
        %1589 = vmatpush1.msra.mxu0 0.0
        %1590 = vmatprep.subr.mxu0 0.0
        %1591 = vmatpush1.msra.mxu0 0.0
        %1592 = vmatprep.subr.mxu0 0.0
        %1593 = vmatpush1.msra.mxu0 0.0
        %1594 = vmatprep.subr.mxu0 0.0
        %1595 = vmatpush1.msra.mxu0 0.0
        %1596 = vmatprep.subr.mxu0 0.0
        %1597 = vmatpush1.msra.mxu0 0.0
        %1598 = vmatprep.subr.mxu0 0.0
        %1599 = vmatpush1.msra.mxu0 0.0
        %1600 = vmatprep.subr.mxu0 0.0
        %1601 = vmatpush1.msra.mxu0 0.0
        %1602 = vmatprep.mubr.f32.mxu0 0.0
        %1603 = vmatmul.mubr.f32.gmra.mrb[0].mxu0 %v1536
        %v1604 = vpop.f32.mrb[0].mxu0
        %v1605 = vadd.f32 0.0, %v1604
        %v1606 = vpop.f32.mrb[0].mxu0
        %1607 = vdwg.mxu0
        %v1608 = vadd.f32 %v1528, %v1605
        %v1609 = vld [vmem:[#allocation5 + $0xa] sm:$0x1]
        %s1610 = scalar_lea.vmem %s5, 224
        %v1611 = vld [vmem:[%s1610] sm:$0xff]
        %v1612 = vld [vmem:[%s1610 + $0x8] sm:$0xff]
        %v1613 = vld [vmem:[%s1610 + $0x10] sm:$0xff]
        %v1614 = vld [vmem:[%s1610 + $0x18] sm:$0xff]
        %v1616 = vsel %vm1012, %v1609, 0
        %1618 = vmatprep.subr.mxu0 0.0
        %1619 = vmatpush1.msra.mxu0 %v1611
        %1620 = vmatprep.subr.mxu0 0.0
        %1621 = vmatpush1.msra.mxu0 %v1612
        %1622 = vmatprep.subr.mxu0 0.0
        %1623 = vmatpush1.msra.mxu0 %v1613
        %1624 = vmatprep.subr.mxu0 0.0
        %1625 = vmatpush1.msra.mxu0 %v1614
        %1626 = vmatprep.subr.mxu0 0.0
        %1627 = vmatpush1.msra.mxu0 0.0
        %1628 = vmatprep.subr.mxu0 0.0
        %1629 = vmatpush1.msra.mxu0 0.0
        %1630 = vmatprep.subr.mxu0 0.0
        %1631 = vmatpush1.msra.mxu0 0.0
        %1632 = vmatprep.subr.mxu0 0.0
        %1633 = vmatpush1.msra.mxu0 0.0
        %1634 = vmatprep.subr.mxu0 0.0
        %1635 = vmatpush1.msra.mxu0 0.0
        %1636 = vmatprep.subr.mxu0 0.0
        %1637 = vmatpush1.msra.mxu0 0.0
        %1638 = vmatprep.subr.mxu0 0.0
        %1639 = vmatpush1.msra.mxu0 0.0
        %1640 = vmatprep.subr.mxu0 0.0
        %1641 = vmatpush1.msra.mxu0 0.0
        %1642 = vmatprep.subr.mxu0 0.0
        %1643 = vmatpush1.msra.mxu0 0.0
        %1644 = vmatprep.subr.mxu0 0.0
        %1645 = vmatpush1.msra.mxu0 0.0
        %1646 = vmatprep.subr.mxu0 0.0
        %1647 = vmatpush1.msra.mxu0 0.0
        %1648 = vmatprep.subr.mxu0 0.0
        %1649 = vmatpush1.msra.mxu0 0.0
        %1650 = vmatprep.subr.mxu0 0.0
        %1651 = vmatpush1.msra.mxu0 0.0
        %1652 = vmatprep.subr.mxu0 0.0
        %1653 = vmatpush1.msra.mxu0 0.0
        %1654 = vmatprep.subr.mxu0 0.0
        %1655 = vmatpush1.msra.mxu0 0.0
        %1656 = vmatprep.subr.mxu0 0.0
        %1657 = vmatpush1.msra.mxu0 0.0
        %1658 = vmatprep.subr.mxu0 0.0
        %1659 = vmatpush1.msra.mxu0 0.0
        %1660 = vmatprep.subr.mxu0 0.0
        %1661 = vmatpush1.msra.mxu0 0.0
        %1662 = vmatprep.subr.mxu0 0.0
        %1663 = vmatpush1.msra.mxu0 0.0
        %1664 = vmatprep.subr.mxu0 0.0
        %1665 = vmatpush1.msra.mxu0 0.0
        %1666 = vmatprep.subr.mxu0 0.0
        %1667 = vmatpush1.msra.mxu0 0.0
        %1668 = vmatprep.subr.mxu0 0.0
        %1669 = vmatpush1.msra.mxu0 0.0
        %1670 = vmatprep.subr.mxu0 0.0
        %1671 = vmatpush1.msra.mxu0 0.0
        %1672 = vmatprep.subr.mxu0 0.0
        %1673 = vmatpush1.msra.mxu0 0.0
        %1674 = vmatprep.subr.mxu0 0.0
        %1675 = vmatpush1.msra.mxu0 0.0
        %1676 = vmatprep.subr.mxu0 0.0
        %1677 = vmatpush1.msra.mxu0 0.0
        %1678 = vmatprep.subr.mxu0 0.0
        %1679 = vmatpush1.msra.mxu0 0.0
        %1680 = vmatprep.subr.mxu0 0.0
        %1681 = vmatpush1.msra.mxu0 0.0
        %1682 = vmatprep.mubr.f32.mxu0 0.0
        %1683 = vmatmul.mubr.f32.gmra.mrb[0].mxu0 %v1616
        %v1684 = vpop.f32.mrb[0].mxu0
        %v1685 = vadd.f32 0.0, %v1684
        %v1686 = vpop.f32.mrb[0].mxu0
        %1687 = vdwg.mxu0
        %v1688 = vadd.f32 %v1608, %v1685
        %v1689 = vld [vmem:[#allocation5 + $0xe] sm:$0x1]
        %s1690 = scalar_lea.vmem %s5, 256
        %v1691 = vld [vmem:[%s1690] sm:$0xff]
        %v1692 = vld [vmem:[%s1690 + $0x8] sm:$0xff]
        %v1693 = vld [vmem:[%s1690 + $0x10] sm:$0xff]
        %v1694 = vld [vmem:[%s1690 + $0x18] sm:$0xff]
        %v1696 = vsel %vm1012, %v1689, 0
        %1698 = vmatprep.subr.mxu0 0.0
        %1699 = vmatpush1.msra.mxu0 %v1691
        %1700 = vmatprep.subr.mxu0 0.0
        %1701 = vmatpush1.msra.mxu0 %v1692
        %1702 = vmatprep.subr.mxu0 0.0
        %1703 = vmatpush1.msra.mxu0 %v1693
        %1704 = vmatprep.subr.mxu0 0.0
        %1705 = vmatpush1.msra.mxu0 %v1694
        %1706 = vmatprep.subr.mxu0 0.0
        %1707 = vmatpush1.msra.mxu0 0.0
        %1708 = vmatprep.subr.mxu0 0.0
        %1709 = vmatpush1.msra.mxu0 0.0
        %1710 = vmatprep.subr.mxu0 0.0
        %1711 = vmatpush1.msra.mxu0 0.0
        %1712 = vmatprep.subr.mxu0 0.0
        %1713 = vmatpush1.msra.mxu0 0.0
        %1714 = vmatprep.subr.mxu0 0.0
        %1715 = vmatpush1.msra.mxu0 0.0
        %1716 = vmatprep.subr.mxu0 0.0
        %1717 = vmatpush1.msra.mxu0 0.0
        %1718 = vmatprep.subr.mxu0 0.0
        %1719 = vmatpush1.msra.mxu0 0.0
        %1720 = vmatprep.subr.mxu0 0.0
        %1721 = vmatpush1.msra.mxu0 0.0
        %1722 = vmatprep.subr.mxu0 0.0
        %1723 = vmatpush1.msra.mxu0 0.0
        %1724 = vmatprep.subr.mxu0 0.0
        %1725 = vmatpush1.msra.mxu0 0.0
        %1726 = vmatprep.subr.mxu0 0.0
        %1727 = vmatpush1.msra.mxu0 0.0
        %1728 = vmatprep.subr.mxu0 0.0
        %1729 = vmatpush1.msra.mxu0 0.0
        %1730 = vmatprep.subr.mxu0 0.0
        %1731 = vmatpush1.msra.mxu0 0.0
        %1732 = vmatprep.subr.mxu0 0.0
        %1733 = vmatpush1.msra.mxu0 0.0
        %1734 = vmatprep.subr.mxu0 0.0
        %1735 = vmatpush1.msra.mxu0 0.0
        %1736 = vmatprep.subr.mxu0 0.0
        %1737 = vmatpush1.msra.mxu0 0.0
        %1738 = vmatprep.subr.mxu0 0.0
        %1739 = vmatpush1.msra.mxu0 0.0
        %1740 = vmatprep.subr.mxu0 0.0
        %1741 = vmatpush1.msra.mxu0 0.0
        %1742 = vmatprep.subr.mxu0 0.0
        %1743 = vmatpush1.msra.mxu0 0.0
        %1744 = vmatprep.subr.mxu0 0.0
        %1745 = vmatpush1.msra.mxu0 0.0
        %1746 = vmatprep.subr.mxu0 0.0
        %1747 = vmatpush1.msra.mxu0 0.0
        %1748 = vmatprep.subr.mxu0 0.0
        %1749 = vmatpush1.msra.mxu0 0.0
        %1750 = vmatprep.subr.mxu0 0.0
        %1751 = vmatpush1.msra.mxu0 0.0
        %1752 = vmatprep.subr.mxu0 0.0
        %1753 = vmatpush1.msra.mxu0 0.0
        %1754 = vmatprep.subr.mxu0 0.0
        %1755 = vmatpush1.msra.mxu0 0.0
        %1756 = vmatprep.subr.mxu0 0.0
        %1757 = vmatpush1.msra.mxu0 0.0
        %1758 = vmatprep.subr.mxu0 0.0
        %1759 = vmatpush1.msra.mxu0 0.0
        %1760 = vmatprep.subr.mxu0 0.0
        %1761 = vmatpush1.msra.mxu0 0.0
        %1762 = vmatprep.mubr.f32.mxu0 0.0
        %1763 = vmatmul.mubr.f32.gmra.mrb[0].mxu0 %v1696
        %v1764 = vpop.f32.mrb[0].mxu0
        %v1765 = vadd.f32 0.0, %v1764
        %v1766 = vpop.f32.mrb[0].mxu0
        %1767 = vdwg.mxu0
        %v1768 = vadd.f32 %v1688, %v1765
        %v1769 = vld [vmem:[#allocation5 + $0xf] sm:$0x1]
        %s1770 = scalar_lea.vmem %s5, 288
        %v1771 = vld [vmem:[%s1770] sm:$0xff]
        %v1772 = vld [vmem:[%s1770 + $0x8] sm:$0xff]
        %v1773 = vld [vmem:[%s1770 + $0x10] sm:$0xff]
        %v1774 = vld [vmem:[%s1770 + $0x18] sm:$0xff]
        %v1776 = vsel %vm1012, %v1769, 0
        %1778 = vmatprep.subr.mxu0 0.0
        %1779 = vmatpush1.msra.mxu0 %v1771
        %1780 = vmatprep.subr.mxu0 0.0
        %1781 = vmatpush1.msra.mxu0 %v1772
        %1782 = vmatprep.subr.mxu0 0.0
        %1783 = vmatpush1.msra.mxu0 %v1773
        %1784 = vmatprep.subr.mxu0 0.0
        %1785 = vmatpush1.msra.mxu0 %v1774
        %1786 = vmatprep.subr.mxu0 0.0
        %1787 = vmatpush1.msra.mxu0 0.0
        %1788 = vmatprep.subr.mxu0 0.0
        %1789 = vmatpush1.msra.mxu0 0.0
        %1790 = vmatprep.subr.mxu0 0.0
        %1791 = vmatpush1.msra.mxu0 0.0
        %1792 = vmatprep.subr.mxu0 0.0
        %1793 = vmatpush1.msra.mxu0 0.0
        %1794 = vmatprep.subr.mxu0 0.0
        %1795 = vmatpush1.msra.mxu0 0.0
        %1796 = vmatprep.subr.mxu0 0.0
        %1797 = vmatpush1.msra.mxu0 0.0
        %1798 = vmatprep.subr.mxu0 0.0
        %1799 = vmatpush1.msra.mxu0 0.0
        %1800 = vmatprep.subr.mxu0 0.0
        %1801 = vmatpush1.msra.mxu0 0.0
        %1802 = vmatprep.subr.mxu0 0.0
        %1803 = vmatpush1.msra.mxu0 0.0
        %1804 = vmatprep.subr.mxu0 0.0
        %1805 = vmatpush1.msra.mxu0 0.0
        %1806 = vmatprep.subr.mxu0 0.0
        %1807 = vmatpush1.msra.mxu0 0.0
        %1808 = vmatprep.subr.mxu0 0.0
        %1809 = vmatpush1.msra.mxu0 0.0
        %1810 = vmatprep.subr.mxu0 0.0
        %1811 = vmatpush1.msra.mxu0 0.0
        %1812 = vmatprep.subr.mxu0 0.0
        %1813 = vmatpush1.msra.mxu0 0.0
        %1814 = vmatprep.subr.mxu0 0.0
        %1815 = vmatpush1.msra.mxu0 0.0
        %1816 = vmatprep.subr.mxu0 0.0
        %1817 = vmatpush1.msra.mxu0 0.0
        %1818 = vmatprep.subr.mxu0 0.0
        %1819 = vmatpush1.msra.mxu0 0.0
        %1820 = vmatprep.subr.mxu0 0.0
        %1821 = vmatpush1.msra.mxu0 0.0
        %1822 = vmatprep.subr.mxu0 0.0
        %1823 = vmatpush1.msra.mxu0 0.0
        %1824 = vmatprep.subr.mxu0 0.0
        %1825 = vmatpush1.msra.mxu0 0.0
        %1826 = vmatprep.subr.mxu0 0.0
        %1827 = vmatpush1.msra.mxu0 0.0
        %1828 = vmatprep.subr.mxu0 0.0
        %1829 = vmatpush1.msra.mxu0 0.0
        %1830 = vmatprep.subr.mxu0 0.0
        %1831 = vmatpush1.msra.mxu0 0.0
        %1832 = vmatprep.subr.mxu0 0.0
        %1833 = vmatpush1.msra.mxu0 0.0
        %1834 = vmatprep.subr.mxu0 0.0
        %1835 = vmatpush1.msra.mxu0 0.0
        %1836 = vmatprep.subr.mxu0 0.0
        %1837 = vmatpush1.msra.mxu0 0.0
        %1838 = vmatprep.subr.mxu0 0.0
        %1839 = vmatpush1.msra.mxu0 0.0
        %1840 = vmatprep.subr.mxu0 0.0
        %1841 = vmatpush1.msra.mxu0 0.0
        %1842 = vmatprep.mubr.f32.mxu0 0.0
        %1843 = vmatmul.mubr.f32.gmra.mrb[0].mxu0 %v1776
        %v1844 = vpop.f32.mrb[0].mxu0
        %v1845 = vadd.f32 0.0, %v1844
        %v1846 = vpop.f32.mrb[0].mxu0
        %1847 = vdwg.mxu0
        %v1848 = vadd.f32 %v1768, %v1845
        %v1849 = vld [vmem:[#allocation5 + $0x10] sm:$0x1]
        %s1850 = scalar_lea.vmem %s5, 320
        %v1851 = vld [vmem:[%s1850] sm:$0xff]
        %v1852 = vld [vmem:[%s1850 + $0x8] sm:$0xff]
        %v1853 = vld [vmem:[%s1850 + $0x10] sm:$0xff]
        %v1854 = vld [vmem:[%s1850 + $0x18] sm:$0xff]
        %v1856 = vsel %vm1012, %v1849, 0
        %1858 = vmatprep.subr.mxu0 0.0
        %1859 = vmatpush1.msra.mxu0 %v1851
        %1860 = vmatprep.subr.mxu0 0.0
        %1861 = vmatpush1.msra.mxu0 %v1852
        %1862 = vmatprep.subr.mxu0 0.0
        %1863 = vmatpush1.msra.mxu0 %v1853
        %1864 = vmatprep.subr.mxu0 0.0
        %1865 = vmatpush1.msra.mxu0 %v1854
        %1866 = vmatprep.subr.mxu0 0.0
        %1867 = vmatpush1.msra.mxu0 0.0
        %1868 = vmatprep.subr.mxu0 0.0
        %1869 = vmatpush1.msra.mxu0 0.0
        %1870 = vmatprep.subr.mxu0 0.0
        %1871 = vmatpush1.msra.mxu0 0.0
        %1872 = vmatprep.subr.mxu0 0.0
        %1873 = vmatpush1.msra.mxu0 0.0
        %1874 = vmatprep.subr.mxu0 0.0
        %1875 = vmatpush1.msra.mxu0 0.0
        %1876 = vmatprep.subr.mxu0 0.0
        %1877 = vmatpush1.msra.mxu0 0.0
        %1878 = vmatprep.subr.mxu0 0.0
        %1879 = vmatpush1.msra.mxu0 0.0
        %1880 = vmatprep.subr.mxu0 0.0
        %1881 = vmatpush1.msra.mxu0 0.0
        %1882 = vmatprep.subr.mxu0 0.0
        %1883 = vmatpush1.msra.mxu0 0.0
        %1884 = vmatprep.subr.mxu0 0.0
        %1885 = vmatpush1.msra.mxu0 0.0
        %1886 = vmatprep.subr.mxu0 0.0
        %1887 = vmatpush1.msra.mxu0 0.0
        %1888 = vmatprep.subr.mxu0 0.0
        %1889 = vmatpush1.msra.mxu0 0.0
        %1890 = vmatprep.subr.mxu0 0.0
        %1891 = vmatpush1.msra.mxu0 0.0
        %1892 = vmatprep.subr.mxu0 0.0
        %1893 = vmatpush1.msra.mxu0 0.0
        %1894 = vmatprep.subr.mxu0 0.0
        %1895 = vmatpush1.msra.mxu0 0.0
        %1896 = vmatprep.subr.mxu0 0.0
        %1897 = vmatpush1.msra.mxu0 0.0
        %1898 = vmatprep.subr.mxu0 0.0
        %1899 = vmatpush1.msra.mxu0 0.0
        %1900 = vmatprep.subr.mxu0 0.0
        %1901 = vmatpush1.msra.mxu0 0.0
        %1902 = vmatprep.subr.mxu0 0.0
        %1903 = vmatpush1.msra.mxu0 0.0
        %1904 = vmatprep.subr.mxu0 0.0
        %1905 = vmatpush1.msra.mxu0 0.0
        %1906 = vmatprep.subr.mxu0 0.0
        %1907 = vmatpush1.msra.mxu0 0.0
        %1908 = vmatprep.subr.mxu0 0.0
        %1909 = vmatpush1.msra.mxu0 0.0
        %1910 = vmatprep.subr.mxu0 0.0
        %1911 = vmatpush1.msra.mxu0 0.0
        %1912 = vmatprep.subr.mxu0 0.0
        %1913 = vmatpush1.msra.mxu0 0.0
        %1914 = vmatprep.subr.mxu0 0.0
        %1915 = vmatpush1.msra.mxu0 0.0
        %1916 = vmatprep.subr.mxu0 0.0
        %1917 = vmatpush1.msra.mxu0 0.0
        %1918 = vmatprep.subr.mxu0 0.0
        %1919 = vmatpush1.msra.mxu0 0.0
        %1920 = vmatprep.subr.mxu0 0.0
        %1921 = vmatpush1.msra.mxu0 0.0
        %1922 = vmatprep.mubr.f32.mxu0 0.0
        %1923 = vmatmul.mubr.f32.gmra.mrb[0].mxu0 %v1856
        %v1924 = vpop.f32.mrb[0].mxu0
        %v1925 = vadd.f32 0.0, %v1924
        %v1926 = vpop.f32.mrb[0].mxu0
        %1927 = vdwg.mxu0
        %v1928 = vadd.f32 %v1848, %v1925
        %v1929 = vld [vmem:[#allocation5 + $0x11] sm:$0x1]
        %s1930 = scalar_lea.vmem %s5, 352
        %v1931 = vld [vmem:[%s1930] sm:$0xff]
        %v1932 = vld [vmem:[%s1930 + $0x8] sm:$0xff]
        %v1933 = vld [vmem:[%s1930 + $0x10] sm:$0xff]
        %v1934 = vld [vmem:[%s1930 + $0x18] sm:$0xff]
        %v1936 = vsel %vm1012, %v1929, 0
        %1938 = vmatprep.subr.mxu0 0.0
        %1939 = vmatpush1.msra.mxu0 %v1931
        %1940 = vmatprep.subr.mxu0 0.0
        %1941 = vmatpush1.msra.mxu0 %v1932
        %1942 = vmatprep.subr.mxu0 0.0
        %1943 = vmatpush1.msra.mxu0 %v1933
        %1944 = vmatprep.subr.mxu0 0.0
        %1945 = vmatpush1.msra.mxu0 %v1934
        %1946 = vmatprep.subr.mxu0 0.0
        %1947 = vmatpush1.msra.mxu0 0.0
        %1948 = vmatprep.subr.mxu0 0.0
        %1949 = vmatpush1.msra.mxu0 0.0
        %1950 = vmatprep.subr.mxu0 0.0
        %1951 = vmatpush1.msra.mxu0 0.0
        %1952 = vmatprep.subr.mxu0 0.0
        %1953 = vmatpush1.msra.mxu0 0.0
        %1954 = vmatprep.subr.mxu0 0.0
        %1955 = vmatpush1.msra.mxu0 0.0
        %1956 = vmatprep.subr.mxu0 0.0
        %1957 = vmatpush1.msra.mxu0 0.0
        %1958 = vmatprep.subr.mxu0 0.0
        %1959 = vmatpush1.msra.mxu0 0.0
        %1960 = vmatprep.subr.mxu0 0.0
        %1961 = vmatpush1.msra.mxu0 0.0
        %1962 = vmatprep.subr.mxu0 0.0
        %1963 = vmatpush1.msra.mxu0 0.0
        %1964 = vmatprep.subr.mxu0 0.0
        %1965 = vmatpush1.msra.mxu0 0.0
        %1966 = vmatprep.subr.mxu0 0.0
        %1967 = vmatpush1.msra.mxu0 0.0
        %1968 = vmatprep.subr.mxu0 0.0
        %1969 = vmatpush1.msra.mxu0 0.0
        %1970 = vmatprep.subr.mxu0 0.0
        %1971 = vmatpush1.msra.mxu0 0.0
        %1972 = vmatprep.subr.mxu0 0.0
        %1973 = vmatpush1.msra.mxu0 0.0
        %1974 = vmatprep.subr.mxu0 0.0
        %1975 = vmatpush1.msra.mxu0 0.0
        %1976 = vmatprep.subr.mxu0 0.0
        %1977 = vmatpush1.msra.mxu0 0.0
        %1978 = vmatprep.subr.mxu0 0.0
        %1979 = vmatpush1.msra.mxu0 0.0
        %1980 = vmatprep.subr.mxu0 0.0
        %1981 = vmatpush1.msra.mxu0 0.0
        %1982 = vmatprep.subr.mxu0 0.0
        %1983 = vmatpush1.msra.mxu0 0.0
        %1984 = vmatprep.subr.mxu0 0.0
        %1985 = vmatpush1.msra.mxu0 0.0
        %1986 = vmatprep.subr.mxu0 0.0
        %1987 = vmatpush1.msra.mxu0 0.0
        %1988 = vmatprep.subr.mxu0 0.0
        %1989 = vmatpush1.msra.mxu0 0.0
        %1990 = vmatprep.subr.mxu0 0.0
        %1991 = vmatpush1.msra.mxu0 0.0
        %1992 = vmatprep.subr.mxu0 0.0
        %1993 = vmatpush1.msra.mxu0 0.0
        %1994 = vmatprep.subr.mxu0 0.0
        %1995 = vmatpush1.msra.mxu0 0.0
        %1996 = vmatprep.subr.mxu0 0.0
        %1997 = vmatpush1.msra.mxu0 0.0
        %1998 = vmatprep.subr.mxu0 0.0
        %1999 = vmatpush1.msra.mxu0 0.0
        %2000 = vmatprep.subr.mxu0 0.0
        %2001 = vmatpush1.msra.mxu0 0.0
        %2002 = vmatprep.mubr.f32.mxu0 0.0
        %2003 = vmatmul.mubr.f32.gmra.mrb[0].mxu0 %v1936
        %v2004 = vpop.f32.mrb[0].mxu0
        %v2005 = vadd.f32 0.0, %v2004
        %v2006 = vpop.f32.mrb[0].mxu0
        %2007 = vdwg.mxu0
        %v2008 = vadd.f32 %v1928, %v2005
        %v2009 = vld [vmem:[#allocation5 + $0x15] sm:$0x1]
        %s2010 = scalar_lea.vmem %s5, 384
        %v2011 = vld [vmem:[%s2010] sm:$0xff]
        %v2012 = vld [vmem:[%s2010 + $0x8] sm:$0xff]
        %v2013 = vld [vmem:[%s2010 + $0x10] sm:$0xff]
        %v2014 = vld [vmem:[%s2010 + $0x18] sm:$0xff]
        %v2016 = vsel %vm1012, %v2009, 0
        %2018 = vmatprep.subr.mxu0 0.0
        %2019 = vmatpush1.msra.mxu0 %v2011
        %2020 = vmatprep.subr.mxu0 0.0
        %2021 = vmatpush1.msra.mxu0 %v2012
        %2022 = vmatprep.subr.mxu0 0.0
        %2023 = vmatpush1.msra.mxu0 %v2013
        %2024 = vmatprep.subr.mxu0 0.0
        %2025 = vmatpush1.msra.mxu0 %v2014
        %2026 = vmatprep.subr.mxu0 0.0
        %2027 = vmatpush1.msra.mxu0 0.0
        %2028 = vmatprep.subr.mxu0 0.0
        %2029 = vmatpush1.msra.mxu0 0.0
        %2030 = vmatprep.subr.mxu0 0.0
        %2031 = vmatpush1.msra.mxu0 0.0
        %2032 = vmatprep.subr.mxu0 0.0
        %2033 = vmatpush1.msra.mxu0 0.0
        %2034 = vmatprep.subr.mxu0 0.0
        %2035 = vmatpush1.msra.mxu0 0.0
        %2036 = vmatprep.subr.mxu0 0.0
        %2037 = vmatpush1.msra.mxu0 0.0
        %2038 = vmatprep.subr.mxu0 0.0
        %2039 = vmatpush1.msra.mxu0 0.0
        %2040 = vmatprep.subr.mxu0 0.0
        %2041 = vmatpush1.msra.mxu0 0.0
        %2042 = vmatprep.subr.mxu0 0.0
        %2043 = vmatpush1.msra.mxu0 0.0
        %2044 = vmatprep.subr.mxu0 0.0
        %2045 = vmatpush1.msra.mxu0 0.0
        %2046 = vmatprep.subr.mxu0 0.0
        %2047 = vmatpush1.msra.mxu0 0.0
        %2048 = vmatprep.subr.mxu0 0.0
        %2049 = vmatpush1.msra.mxu0 0.0
        %2050 = vmatprep.subr.mxu0 0.0
        %2051 = vmatpush1.msra.mxu0 0.0
        %2052 = vmatprep.subr.mxu0 0.0
        %2053 = vmatpush1.msra.mxu0 0.0
        %2054 = vmatprep.subr.mxu0 0.0
        %2055 = vmatpush1.msra.mxu0 0.0
        %2056 = vmatprep.subr.mxu0 0.0
        %2057 = vmatpush1.msra.mxu0 0.0
        %2058 = vmatprep.subr.mxu0 0.0
        %2059 = vmatpush1.msra.mxu0 0.0
        %2060 = vmatprep.subr.mxu0 0.0
        %2061 = vmatpush1.msra.mxu0 0.0
        %2062 = vmatprep.subr.mxu0 0.0
        %2063 = vmatpush1.msra.mxu0 0.0
        %2064 = vmatprep.subr.mxu0 0.0
        %2065 = vmatpush1.msra.mxu0 0.0
        %2066 = vmatprep.subr.mxu0 0.0
        %2067 = vmatpush1.msra.mxu0 0.0
        %2068 = vmatprep.subr.mxu0 0.0
        %2069 = vmatpush1.msra.mxu0 0.0
        %2070 = vmatprep.subr.mxu0 0.0
        %2071 = vmatpush1.msra.mxu0 0.0
        %2072 = vmatprep.subr.mxu0 0.0
        %2073 = vmatpush1.msra.mxu0 0.0
        %2074 = vmatprep.subr.mxu0 0.0
        %2075 = vmatpush1.msra.mxu0 0.0
        %2076 = vmatprep.subr.mxu0 0.0
        %2077 = vmatpush1.msra.mxu0 0.0
        %2078 = vmatprep.subr.mxu0 0.0
        %2079 = vmatpush1.msra.mxu0 0.0
        %2080 = vmatprep.subr.mxu0 0.0
        %2081 = vmatpush1.msra.mxu0 0.0
        %2082 = vmatprep.mubr.f32.mxu0 0.0
        %2083 = vmatmul.mubr.f32.gmra.mrb[0].mxu0 %v2016
        %v2084 = vpop.f32.mrb[0].mxu0
        %v2085 = vadd.f32 0.0, %v2084
        %v2086 = vpop.f32.mrb[0].mxu0
        %2087 = vdwg.mxu0
        %v2088 = vadd.f32 %v2008, %v2085
        %v2089 = vld [vmem:[#allocation5 + $0x16] sm:$0x1]
        %s2090 = scalar_lea.vmem %s5, 416
        %v2091 = vld [vmem:[%s2090] sm:$0xff]
        %v2092 = vld [vmem:[%s2090 + $0x8] sm:$0xff]
        %v2093 = vld [vmem:[%s2090 + $0x10] sm:$0xff]
        %v2094 = vld [vmem:[%s2090 + $0x18] sm:$0xff]
        %v2096 = vsel %vm1012, %v2089, 0
        %2098 = vmatprep.subr.mxu0 0.0
        %2099 = vmatpush1.msra.mxu0 %v2091
        %2100 = vmatprep.subr.mxu0 0.0
        %2101 = vmatpush1.msra.mxu0 %v2092
        %2102 = vmatprep.subr.mxu0 0.0
        %2103 = vmatpush1.msra.mxu0 %v2093
        %2104 = vmatprep.subr.mxu0 0.0
        %2105 = vmatpush1.msra.mxu0 %v2094
        %2106 = vmatprep.subr.mxu0 0.0
        %2107 = vmatpush1.msra.mxu0 0.0
        %2108 = vmatprep.subr.mxu0 0.0
        %2109 = vmatpush1.msra.mxu0 0.0
        %2110 = vmatprep.subr.mxu0 0.0
        %2111 = vmatpush1.msra.mxu0 0.0
        %2112 = vmatprep.subr.mxu0 0.0
        %2113 = vmatpush1.msra.mxu0 0.0
        %2114 = vmatprep.subr.mxu0 0.0
        %2115 = vmatpush1.msra.mxu0 0.0
        %2116 = vmatprep.subr.mxu0 0.0
        %2117 = vmatpush1.msra.mxu0 0.0
        %2118 = vmatprep.subr.mxu0 0.0
        %2119 = vmatpush1.msra.mxu0 0.0
        %2120 = vmatprep.subr.mxu0 0.0
        %2121 = vmatpush1.msra.mxu0 0.0
        %2122 = vmatprep.subr.mxu0 0.0
        %2123 = vmatpush1.msra.mxu0 0.0
        %2124 = vmatprep.subr.mxu0 0.0
        %2125 = vmatpush1.msra.mxu0 0.0
        %2126 = vmatprep.subr.mxu0 0.0
        %2127 = vmatpush1.msra.mxu0 0.0
        %2128 = vmatprep.subr.mxu0 0.0
        %2129 = vmatpush1.msra.mxu0 0.0
        %2130 = vmatprep.subr.mxu0 0.0
        %2131 = vmatpush1.msra.mxu0 0.0
        %2132 = vmatprep.subr.mxu0 0.0
        %2133 = vmatpush1.msra.mxu0 0.0
        %2134 = vmatprep.subr.mxu0 0.0
        %2135 = vmatpush1.msra.mxu0 0.0
        %2136 = vmatprep.subr.mxu0 0.0
        %2137 = vmatpush1.msra.mxu0 0.0
        %2138 = vmatprep.subr.mxu0 0.0
        %2139 = vmatpush1.msra.mxu0 0.0
        %2140 = vmatprep.subr.mxu0 0.0
        %2141 = vmatpush1.msra.mxu0 0.0
        %2142 = vmatprep.subr.mxu0 0.0
        %2143 = vmatpush1.msra.mxu0 0.0
        %2144 = vmatprep.subr.mxu0 0.0
        %2145 = vmatpush1.msra.mxu0 0.0
        %2146 = vmatprep.subr.mxu0 0.0
        %2147 = vmatpush1.msra.mxu0 0.0
        %2148 = vmatprep.subr.mxu0 0.0
        %2149 = vmatpush1.msra.mxu0 0.0
        %2150 = vmatprep.subr.mxu0 0.0
        %2151 = vmatpush1.msra.mxu0 0.0
        %2152 = vmatprep.subr.mxu0 0.0
        %2153 = vmatpush1.msra.mxu0 0.0
        %2154 = vmatprep.subr.mxu0 0.0
        %2155 = vmatpush1.msra.mxu0 0.0
        %2156 = vmatprep.subr.mxu0 0.0
        %2157 = vmatpush1.msra.mxu0 0.0
        %2158 = vmatprep.subr.mxu0 0.0
        %2159 = vmatpush1.msra.mxu0 0.0
        %2160 = vmatprep.subr.mxu0 0.0
        %2161 = vmatpush1.msra.mxu0 0.0
        %2162 = vmatprep.mubr.f32.mxu0 0.0
        %2163 = vmatmul.mubr.f32.gmra.mrb[0].mxu0 %v2096
        %v2164 = vpop.f32.mrb[0].mxu0
        %v2165 = vadd.f32 0.0, %v2164
        %v2166 = vpop.f32.mrb[0].mxu0
        %2167 = vdwg.mxu0
        %v2168 = vadd.f32 %v2088, %v2165
        %v2169 = vld [vmem:[#allocation5 + $0x17] sm:$0x1]
        %s2170 = scalar_lea.vmem %s5, 448
        %v2171 = vld [vmem:[%s2170] sm:$0xff]
        %v2172 = vld [vmem:[%s2170 + $0x8] sm:$0xff]
        %v2173 = vld [vmem:[%s2170 + $0x10] sm:$0xff]
        %v2174 = vld [vmem:[%s2170 + $0x18] sm:$0xff]
        %v2176 = vsel %vm1012, %v2169, 0
        %2178 = vmatprep.subr.mxu0 0.0
        %2179 = vmatpush1.msra.mxu0 %v2171
        %2180 = vmatprep.subr.mxu0 0.0
        %2181 = vmatpush1.msra.mxu0 %v2172
        %2182 = vmatprep.subr.mxu0 0.0
        %2183 = vmatpush1.msra.mxu0 %v2173
        %2184 = vmatprep.subr.mxu0 0.0
        %2185 = vmatpush1.msra.mxu0 %v2174
        %2186 = vmatprep.subr.mxu0 0.0
        %2187 = vmatpush1.msra.mxu0 0.0
        %2188 = vmatprep.subr.mxu0 0.0
        %2189 = vmatpush1.msra.mxu0 0.0
        %2190 = vmatprep.subr.mxu0 0.0
        %2191 = vmatpush1.msra.mxu0 0.0
        %2192 = vmatprep.subr.mxu0 0.0
        %2193 = vmatpush1.msra.mxu0 0.0
        %2194 = vmatprep.subr.mxu0 0.0
        %2195 = vmatpush1.msra.mxu0 0.0
        %2196 = vmatprep.subr.mxu0 0.0
        %2197 = vmatpush1.msra.mxu0 0.0
        %2198 = vmatprep.subr.mxu0 0.0
        %2199 = vmatpush1.msra.mxu0 0.0
        %2200 = vmatprep.subr.mxu0 0.0
        %2201 = vmatpush1.msra.mxu0 0.0
        %2202 = vmatprep.subr.mxu0 0.0
        %2203 = vmatpush1.msra.mxu0 0.0
        %2204 = vmatprep.subr.mxu0 0.0
        %2205 = vmatpush1.msra.mxu0 0.0
        %2206 = vmatprep.subr.mxu0 0.0
        %2207 = vmatpush1.msra.mxu0 0.0
        %2208 = vmatprep.subr.mxu0 0.0
        %2209 = vmatpush1.msra.mxu0 0.0
        %2210 = vmatprep.subr.mxu0 0.0
        %2211 = vmatpush1.msra.mxu0 0.0
        %2212 = vmatprep.subr.mxu0 0.0
        %2213 = vmatpush1.msra.mxu0 0.0
        %2214 = vmatprep.subr.mxu0 0.0
        %2215 = vmatpush1.msra.mxu0 0.0
        %2216 = vmatprep.subr.mxu0 0.0
        %2217 = vmatpush1.msra.mxu0 0.0
        %2218 = vmatprep.subr.mxu0 0.0
        %2219 = vmatpush1.msra.mxu0 0.0
        %2220 = vmatprep.subr.mxu0 0.0
        %2221 = vmatpush1.msra.mxu0 0.0
        %2222 = vmatprep.subr.mxu0 0.0
        %2223 = vmatpush1.msra.mxu0 0.0
        %2224 = vmatprep.subr.mxu0 0.0
        %2225 = vmatpush1.msra.mxu0 0.0
        %2226 = vmatprep.subr.mxu0 0.0
        %2227 = vmatpush1.msra.mxu0 0.0
        %2228 = vmatprep.subr.mxu0 0.0
        %2229 = vmatpush1.msra.mxu0 0.0
        %2230 = vmatprep.subr.mxu0 0.0
        %2231 = vmatpush1.msra.mxu0 0.0
        %2232 = vmatprep.subr.mxu0 0.0
        %2233 = vmatpush1.msra.mxu0 0.0
        %2234 = vmatprep.subr.mxu0 0.0
        %2235 = vmatpush1.msra.mxu0 0.0
        %2236 = vmatprep.subr.mxu0 0.0
        %2237 = vmatpush1.msra.mxu0 0.0
        %2238 = vmatprep.subr.mxu0 0.0
        %2239 = vmatpush1.msra.mxu0 0.0
        %2240 = vmatprep.subr.mxu0 0.0
        %2241 = vmatpush1.msra.mxu0 0.0
        %2242 = vmatprep.mubr.f32.mxu0 0.0
        %2243 = vmatmul.mubr.f32.gmra.mrb[0].mxu0 %v2176
        %v2244 = vpop.f32.mrb[0].mxu0
        %v2245 = vadd.f32 0.0, %v2244
        %v2246 = vpop.f32.mrb[0].mxu0
        %2247 = vdwg.mxu0
        %v2248 = vadd.f32 %v2168, %v2245
        %v2249 = vld [vmem:[#allocation5 + $0x18] sm:$0x1]
        %s2250 = scalar_lea.vmem %s5, 480
        %v2251 = vld [vmem:[%s2250] sm:$0xff]
        %v2252 = vld [vmem:[%s2250 + $0x8] sm:$0xff]
        %v2253 = vld [vmem:[%s2250 + $0x10] sm:$0xff]
        %v2254 = vld [vmem:[%s2250 + $0x18] sm:$0xff]
        %v2256 = vsel %vm1012, %v2249, 0
        %2258 = vmatprep.subr.mxu0 0.0
        %2259 = vmatpush1.msra.mxu0 %v2251
        %2260 = vmatprep.subr.mxu0 0.0
        %2261 = vmatpush1.msra.mxu0 %v2252
        %2262 = vmatprep.subr.mxu0 0.0
        %2263 = vmatpush1.msra.mxu0 %v2253
        %2264 = vmatprep.subr.mxu0 0.0
        %2265 = vmatpush1.msra.mxu0 %v2254
        %2266 = vmatprep.subr.mxu0 0.0
        %2267 = vmatpush1.msra.mxu0 0.0
        %2268 = vmatprep.subr.mxu0 0.0
        %2269 = vmatpush1.msra.mxu0 0.0
        %2270 = vmatprep.subr.mxu0 0.0
        %2271 = vmatpush1.msra.mxu0 0.0
        %2272 = vmatprep.subr.mxu0 0.0
        %2273 = vmatpush1.msra.mxu0 0.0
        %2274 = vmatprep.subr.mxu0 0.0
        %2275 = vmatpush1.msra.mxu0 0.0
        %2276 = vmatprep.subr.mxu0 0.0
        %2277 = vmatpush1.msra.mxu0 0.0
        %2278 = vmatprep.subr.mxu0 0.0
        %2279 = vmatpush1.msra.mxu0 0.0
        %2280 = vmatprep.subr.mxu0 0.0
        %2281 = vmatpush1.msra.mxu0 0.0
        %2282 = vmatprep.subr.mxu0 0.0
        %2283 = vmatpush1.msra.mxu0 0.0
        %2284 = vmatprep.subr.mxu0 0.0
        %2285 = vmatpush1.msra.mxu0 0.0
        %2286 = vmatprep.subr.mxu0 0.0
        %2287 = vmatpush1.msra.mxu0 0.0
        %2288 = vmatprep.subr.mxu0 0.0
        %2289 = vmatpush1.msra.mxu0 0.0
        %2290 = vmatprep.subr.mxu0 0.0
        %2291 = vmatpush1.msra.mxu0 0.0
        %2292 = vmatprep.subr.mxu0 0.0
        %2293 = vmatpush1.msra.mxu0 0.0
        %2294 = vmatprep.subr.mxu0 0.0
        %2295 = vmatpush1.msra.mxu0 0.0
        %2296 = vmatprep.subr.mxu0 0.0
        %2297 = vmatpush1.msra.mxu0 0.0
        %2298 = vmatprep.subr.mxu0 0.0
        %2299 = vmatpush1.msra.mxu0 0.0
        %2300 = vmatprep.subr.mxu0 0.0
        %2301 = vmatpush1.msra.mxu0 0.0
        %2302 = vmatprep.subr.mxu0 0.0
        %2303 = vmatpush1.msra.mxu0 0.0
        %2304 = vmatprep.subr.mxu0 0.0
        %2305 = vmatpush1.msra.mxu0 0.0
        %2306 = vmatprep.subr.mxu0 0.0
        %2307 = vmatpush1.msra.mxu0 0.0
        %2308 = vmatprep.subr.mxu0 0.0
        %2309 = vmatpush1.msra.mxu0 0.0
        %2310 = vmatprep.subr.mxu0 0.0
        %2311 = vmatpush1.msra.mxu0 0.0
        %2312 = vmatprep.subr.mxu0 0.0
        %2313 = vmatpush1.msra.mxu0 0.0
        %2314 = vmatprep.subr.mxu0 0.0
        %2315 = vmatpush1.msra.mxu0 0.0
        %2316 = vmatprep.subr.mxu0 0.0
        %2317 = vmatpush1.msra.mxu0 0.0
        %2318 = vmatprep.subr.mxu0 0.0
        %2319 = vmatpush1.msra.mxu0 0.0
        %2320 = vmatprep.subr.mxu0 0.0
        %2321 = vmatpush1.msra.mxu0 0.0
        %2322 = vmatprep.mubr.f32.mxu0 0.0
        %2323 = vmatmul.mubr.f32.gmra.mrb[0].mxu0 %v2256
        %v2324 = vpop.f32.mrb[0].mxu0
        %v2325 = vadd.f32 0.0, %v2324
        %v2326 = vpop.f32.mrb[0].mxu0
        %2327 = vdwg.mxu0
        %v2328 = vadd.f32 %v2248, %v2325
        %v2329 = vmax.f32 %v2328, 0.0
        %v2330 = vld [vmem:[%s7] sm:$0xff]
        %v2331 = vld [vmem:[%s7 + $0x8] sm:$0xff]
        %v2332 = vld [vmem:[%s7 + $0x10] sm:$0xff]
        %v2333 = vld [vmem:[%s7 + $0x18] sm:$0xff]
        %v2334 = vld [vmem:[%s8] sm:$0x1]
        %v2336 = vsel %vm1012, %v2329, 0
        %2338 = vmatprep.subr.mxu0 0.0
        %2339 = vmatpush1.msra.mxu0 %v2330
        %2340 = vmatprep.subr.mxu0 0.0
        %2341 = vmatpush1.msra.mxu0 %v2331
        %2342 = vmatprep.subr.mxu0 0.0
        %2343 = vmatpush1.msra.mxu0 %v2332
        %2344 = vmatprep.subr.mxu0 0.0
        %2345 = vmatpush1.msra.mxu0 %v2333
        %2346 = vmatprep.subr.mxu0 0.0
        %2347 = vmatpush1.msra.mxu0 0.0
        %2348 = vmatprep.subr.mxu0 0.0
        %2349 = vmatpush1.msra.mxu0 0.0
        %2350 = vmatprep.subr.mxu0 0.0
        %2351 = vmatpush1.msra.mxu0 0.0
        %2352 = vmatprep.subr.mxu0 0.0
        %2353 = vmatpush1.msra.mxu0 0.0
        %2354 = vmatprep.subr.mxu0 0.0
        %2355 = vmatpush1.msra.mxu0 0.0
        %2356 = vmatprep.subr.mxu0 0.0
        %2357 = vmatpush1.msra.mxu0 0.0
        %2358 = vmatprep.subr.mxu0 0.0
        %2359 = vmatpush1.msra.mxu0 0.0
        %2360 = vmatprep.subr.mxu0 0.0
        %2361 = vmatpush1.msra.mxu0 0.0
        %2362 = vmatprep.subr.mxu0 0.0
        %2363 = vmatpush1.msra.mxu0 0.0
        %2364 = vmatprep.subr.mxu0 0.0
        %2365 = vmatpush1.msra.mxu0 0.0
        %2366 = vmatprep.subr.mxu0 0.0
        %2367 = vmatpush1.msra.mxu0 0.0
        %2368 = vmatprep.subr.mxu0 0.0
        %2369 = vmatpush1.msra.mxu0 0.0
        %2370 = vmatprep.subr.mxu0 0.0
        %2371 = vmatpush1.msra.mxu0 0.0
        %2372 = vmatprep.subr.mxu0 0.0
        %2373 = vmatpush1.msra.mxu0 0.0
        %2374 = vmatprep.subr.mxu0 0.0
        %2375 = vmatpush1.msra.mxu0 0.0
        %2376 = vmatprep.subr.mxu0 0.0
        %2377 = vmatpush1.msra.mxu0 0.0
        %2378 = vmatprep.subr.mxu0 0.0
        %2379 = vmatpush1.msra.mxu0 0.0
        %2380 = vmatprep.subr.mxu0 0.0
        %2381 = vmatpush1.msra.mxu0 0.0
        %2382 = vmatprep.subr.mxu0 0.0
        %2383 = vmatpush1.msra.mxu0 0.0
        %2384 = vmatprep.subr.mxu0 0.0
        %2385 = vmatpush1.msra.mxu0 0.0
        %2386 = vmatprep.subr.mxu0 0.0
        %2387 = vmatpush1.msra.mxu0 0.0
        %2388 = vmatprep.subr.mxu0 0.0
        %2389 = vmatpush1.msra.mxu0 0.0
        %2390 = vmatprep.subr.mxu0 0.0
        %2391 = vmatpush1.msra.mxu0 0.0
        %2392 = vmatprep.subr.mxu0 0.0
        %2393 = vmatpush1.msra.mxu0 0.0
        %2394 = vmatprep.subr.mxu0 0.0
        %2395 = vmatpush1.msra.mxu0 0.0
        %2396 = vmatprep.subr.mxu0 0.0
        %2397 = vmatpush1.msra.mxu0 0.0
        %2398 = vmatprep.subr.mxu0 0.0
        %2399 = vmatpush1.msra.mxu0 0.0
        %2400 = vmatprep.subr.mxu0 0.0
        %2401 = vmatpush1.msra.mxu0 0.0
        %2402 = vmatprep.mubr.f32.mxu0 0.0
        %2403 = vmatmul.mubr.f32.gmra.mrb[0].mxu0 %v2336
        %v2404 = vpop.f32.mrb[0].mxu0
        %v2405 = vadd.f32 %v2334, %v2404
        %v2406 = vpop.f32.mrb[0].mxu0
        %2407 = vdwg.mxu0
        %vm2408 = vcmask 24576
        %2409 = vst.msk [vmem:[%s324] sm:$0x1] %vm2408, %v2405
        %s2410 = sand.u32 %s225, 1
        %s2411 = scalar_lea.sflag [#allocation7], %s2410
        %s2412 = sand.u32 %s225, 1
        %s2413 = scalar_lea.vmem [#allocation6], %s2412
        // Predicated region
        $region57: #{net_forward.1} parent=55 // pred_check
          %p2414 = pneg %p235
        $region58: #{net_forward.1} parent=55 // pred_check_branch
          %2416 = sbr.rel (%p2414) target = $region60
        $region59: #{net_forward.1} parent=55 // pred_region
          %s2418 = ssub.s32 16, 16
          %2419 = vsyncadd %s2411, %s2418
          %s2420 = smul.addr %s23, 16
          %s2421 = scalar_lea.hbm %s9, %s2420
          %s2423 = sshll.u32 %s2413, 4
          %s2424 = int_to_ptr.vmem [resolvable:$true] %s2423
          %2426 = dma.vmem_to_hbm [thread:$0]  %s2424, 16, %s2421, %s2411
        $region60: #{net_forward.1} parent=55 // pred_fallthru
          _
      $region56: #{net_forward.1} parent=5 // pred_fallthru
        _
      %p2427 = scmp.le.s32.totalorder 2, %s18
      // Predicated region
      $region61: #{net_forward.1} parent=5 // pred_check
        %p2428 = pneg %p2427
      $region62: #{net_forward.1} parent=5 // pred_check_branch
        %2430 = sbr.rel (%p2428) target = $region64
      $region63: #{net_forward.1} parent=5 // pred_region
        %s2431 = ssub.s32 %s18, 2
        // Predicated region
        $region65: #{net_forward.1} parent=63 // pred_check
          %p2432 = pneg %p241
        $region66: #{net_forward.1} parent=63 // pred_check_branch
          %2434 = sbr.rel (%p2432) target = $region68
        $region67: #{net_forward.1} parent=63 // pred_region
          %s2435 = sand.u32 %s226, 1
          %s2436 = scalar_lea.sflag [#allocation7], %s2435
          %s2437 = sand.u32 %s226, 1
          %s2438 = scalar_lea.vmem [#allocation6], %s2437
          %2439 = dma.done %s2436, 16
        $region68: #{net_forward.1} parent=63 // pred_fallthru
          _
      $region64: #{net_forward.1} parent=5 // pred_fallthru
        _
    $region6: #{net_forward.1} parent=1 // loop_footer
      %s22 = sadd.s32 1, %s18
    $region7: #{net_forward.1} parent=1 // loop_footer_branch
      %17 = sbr.rel target = $region3
    $region8: #{net_forward.1} parent=1 // loop_exit
      _
    %2440 = vsyncpa [#allocation7], 1
    %s2441 = scalar_lea.sflag [#allocation7], 1
    %2442 = vsyncpa %s2441, 1

</llo_original>
